<compile_context>
chip_gen: v6e
topology: v6e:2x2x1
jax: 0.10.0
libtpu: 0.0.40
codegen_flags: <defaults>
</compile_context>

<pallas_src>
import functools

import jax
import jax.numpy as jnp
from jax.experimental import pallas as pl
from jax.experimental.pallas import tpu as pltpu


N_INPUTS = (784, 256, 128, 64, 32, 16)
_LANE = 128


def _round_up(n, m):
    return ((n + m - 1) // m) * m


def _layer_dims(n_inputs=N_INPUTS):
    dims = list(n_inputs)
    layer_dims = []
    for i in range(len(dims) - 1):                      # encoders
        layer_dims.append((dims[i], dims[i + 1]))
    for i in reversed(range(1, len(dims))):             # decoders (mirror)
        layer_dims.append((dims[i], dims[i - 1]))
    return layer_dims


def init_autoencoder_params(key, n_inputs=N_INPUTS):
    """nn.Linear-style init, stored as (in, out) for x @ W (+ bias (1, out))."""
    params = []
    for (din, dout) in _layer_dims(n_inputs):
        key, kw, kb = jax.random.split(key, 3)
        bound = 1.0 / jnp.sqrt(jnp.float32(din))
        w = jax.random.uniform(kw, (din, dout), jnp.float32, -bound, bound)
        b = jax.random.uniform(kb, (1, dout), jnp.float32, -bound, bound)
        params.append((w, b))
    return params


def _pad_dim(d):
    # Pad sub-128 hidden dims up to one full lane; 128/256/784 stay unchanged.
    return _LANE if d < _LANE else d


def prepare_params(params):
    """Zero-pad narrow feature dims to 128 and cast W->bf16, b->f32.

    Zero-padded columns get zero bias, so after ReLU they stay exactly 0 and
    the zero-padded rows of the next layer's W contribute nothing: the real
    outputs are bit-for-bit unaffected by the padding.
    """
    prepared = []
    for (w, b) in params:
        din, dout = w.shape
        pdin, pdout = _pad_dim(din), _pad_dim(dout)
        if (pdin, pdout) != (din, dout):
            w = jnp.pad(w, ((0, pdin - din), (0, pdout - dout)))
            b = jnp.pad(b, ((0, 0), (0, pdout - dout)))
        prepared.append((w.astype(jnp.bfloat16), b.astype(jnp.float32)))
    return prepared


def _autoencoder_kernel(x_ref, *refs):
    """Fused forward: h = relu(bf16(h) @ W_bf16 + b_f32) for every layer.

    refs = [w0, b0, w1, b1, ..., w{L-1}, b{L-1}, o_ref].  The Python loop is
    unrolled at trace time (layer count is static), so the whole chain is one
    straight-line MXU/VPU sequence on VMEM-resident weights.
    """
    *wb_refs, o_ref = refs
    h = x_ref[...].astype(jnp.float32)
    for i in range(0, len(wb_refs), 2):
        w = wb_refs[i][...]                              # (Din, Dout) bf16
        b = wb_refs[i + 1][...]                          # (1,   Dout) f32
        acc = jnp.dot(h.astype(jnp.bfloat16), w,
                      preferred_element_type=jnp.float32)
        h = jnp.maximum(acc + b, 0.0)                    # bias/ReLU in f32
    o_ref[...] = h.astype(o_ref.dtype)


@functools.partial(jax.jit, static_argnames=("block_b",))
def autoencoder_forward(x, prepared_params, *, block_b=1024):
    """Full autoencoder forward as one Pallas kernel.

    x: (B, 784) f32; prepared_params: list of (W:(Din,Dout) bf16, b:(1,Dout) f32)
    from prepare_params().  Batch is tiled on a 1-D "parallel" grid; weights
    use a constant index_map and are single-buffered (resident in VMEM).
    """
    B, d_in = x.shape
    d_out = prepared_params[-1][0].shape[1]

    # Batch tile: cap at block_b, keep it a multiple of 8 (sublane), and give
    # the grid >= 2 steps whenever B >= 16 so both v7x TensorCores get work.
    if B < 8:
        bb = B                                   # block == full batch dim
    else:
        bb = min(block_b, _round_up(pl.cdiv(B, 2), 8))
    grid = (pl.cdiv(B, bb),)                     # partial last block is masked

    in_specs = [pl.BlockSpec((bb, d_in), lambda i: (i, 0))]
    flat_wb = []
    for (w, b) in prepared_params:
        # Constant index_map + single buffering: weights stay resident, no
        # re-DMA and no wasted second buffer.
        in_specs.append(pl.BlockSpec(w.shape, lambda i: (0, 0),
                                     pipeline_mode=pl.Buffered(buffer_count=1)))
        in_specs.append(pl.BlockSpec(b.shape, lambda i: (0, 0),
                                     pipeline_mode=pl.Buffered(buffer_count=1)))
        flat_wb.append(w)
        flat_wb.append(b)

    flops = 2 * B * sum(int(w.shape[0]) * int(w.shape[1])
                        for (w, _) in prepared_params)
    bytes_accessed = (B * d_in * x.dtype.itemsize + B * d_out * 4
                      + sum(w.size * w.dtype.itemsize + b.size * b.dtype.itemsize
                            for (w, b) in prepared_params))

    return pl.pallas_call(
        _autoencoder_kernel,
        out_shape=jax.ShapeDtypeStruct((B, d_out), x.dtype),
        grid=grid,
        in_specs=in_specs,
        out_specs=pl.BlockSpec((bb, d_out), lambda i: (i, 0)),
        compiler_params=pltpu.CompilerParams(
            dimension_semantics=("parallel",),
            vmem_limit_bytes=48 * 1024 * 1024),
        cost_estimate=pl.CostEstimate(flops=flops, transcendentals=0,
                                      bytes_accessed=bytes_accessed),
    )(x, *flat_wb)


def _reference_forward(x, prepared_params):
    """Pure-JAX reference using the exact same bf16-matmul / f32-ReLU recipe."""
    h = x.astype(jnp.float32)
    for (w, b) in prepared_params:
        acc = jnp.dot(h.astype(jnp.bfloat16), w,
                      preferred_element_type=jnp.float32)
        h = jnp.maximum(acc + b, 0.0)
    return h


if __name__ == "__main__":
    key = jax.random.PRNGKey(0)
    kx, kp = jax.random.split(key)

    batch = 8
    x = jax.random.uniform(kx, (batch, N_INPUTS[0]), jnp.float32)  # MNIST-like flat input
    params = init_autoencoder_params(kp, N_INPUTS)
    prepared = prepare_params(params)

    out = autoencoder_forward(x, prepared)
    out = jax.block_until_ready(out)

    assert out.shape == (batch, N_INPUTS[0]), out.shape
    ref = _reference_forward(x, prepared)
    assert jnp.allclose(out, ref, atol=2e-3, rtol=2e-3), float(
        jnp.max(jnp.abs(out - ref)))

    print("KERNEL_OK")
</pallas_src>

<mosaic_0001>
module attributes {stable_mosaic.version = 11 : i64} {
  func.func @_autoencoder_kernel(%arg0: i32, %arg1: memref<8x784xf32, #tpu.memory_space<vmem>>, %arg2: memref<784x256xbf16, #tpu.memory_space<vmem>>, %arg3: memref<1x256xf32, #tpu.memory_space<vmem>>, %arg4: memref<256x128xbf16, #tpu.memory_space<vmem>>, %arg5: memref<1x128xf32, #tpu.memory_space<vmem>>, %arg6: memref<128x128xbf16, #tpu.memory_space<vmem>>, %arg7: memref<1x128xf32, #tpu.memory_space<vmem>>, %arg8: memref<128x128xbf16, #tpu.memory_space<vmem>>, %arg9: memref<1x128xf32, #tpu.memory_space<vmem>>, %arg10: memref<128x128xbf16, #tpu.memory_space<vmem>>, %arg11: memref<1x128xf32, #tpu.memory_space<vmem>>, %arg12: memref<128x128xbf16, #tpu.memory_space<vmem>>, %arg13: memref<1x128xf32, #tpu.memory_space<vmem>>, %arg14: memref<128x128xbf16, #tpu.memory_space<vmem>>, %arg15: memref<1x128xf32, #tpu.memory_space<vmem>>, %arg16: memref<128x128xbf16, #tpu.memory_space<vmem>>, %arg17: memref<1x128xf32, #tpu.memory_space<vmem>>, %arg18: memref<128x256xbf16, #tpu.memory_space<vmem>>, %arg19: memref<1x256xf32, #tpu.memory_space<vmem>>, %arg20: memref<256x784xbf16, #tpu.memory_space<vmem>>, %arg21: memref<1x784xf32, #tpu.memory_space<vmem>>, %arg22: memref<8x784xf32, #tpu.memory_space<vmem>>) attributes {dimension_semantics = [#tpu.dimension_semantics<parallel>], iteration_bounds = array<i64: 1>, scalar_prefetch = 0 : i64, scratch_operands = 0 : i64, tpu.core_type = #tpu.core_type<tc>, window_params = [{transform_indices = @transform_0, window_bounds = array<i64: 8, 784>}, {pipeline_mode = #tpu.pipeline_mode<synchronous>, transform_indices = @transform_1, window_bounds = array<i64: 784, 256>}, {pipeline_mode = #tpu.pipeline_mode<synchronous>, transform_indices = @transform_2, window_bounds = array<i64: 1, 256>}, {pipeline_mode = #tpu.pipeline_mode<synchronous>, transform_indices = @transform_3, window_bounds = array<i64: 256, 128>}, {pipeline_mode = #tpu.pipeline_mode<synchronous>, transform_indices = @transform_4, window_bounds = array<i64: 1, 128>}, {pipeline_mode = #tpu.pipeline_mode<synchronous>, transform_indices = @transform_5, window_bounds = array<i64: 128, 128>}, {pipeline_mode = #tpu.pipeline_mode<synchronous>, transform_indices = @transform_6, window_bounds = array<i64: 1, 128>}, {pipeline_mode = #tpu.pipeline_mode<synchronous>, transform_indices = @transform_7, window_bounds = array<i64: 128, 128>}, {pipeline_mode = #tpu.pipeline_mode<synchronous>, transform_indices = @transform_8, window_bounds = array<i64: 1, 128>}, {pipeline_mode = #tpu.pipeline_mode<synchronous>, transform_indices = @transform_9, window_bounds = array<i64: 128, 128>}, {pipeline_mode = #tpu.pipeline_mode<synchronous>, transform_indices = @transform_10, window_bounds = array<i64: 1, 128>}, {pipeline_mode = #tpu.pipeline_mode<synchronous>, transform_indices = @transform_11, window_bounds = array<i64: 128, 128>}, {pipeline_mode = #tpu.pipeline_mode<synchronous>, transform_indices = @transform_12, window_bounds = array<i64: 1, 128>}, {pipeline_mode = #tpu.pipeline_mode<synchronous>, transform_indices = @transform_13, window_bounds = array<i64: 128, 128>}, {pipeline_mode = #tpu.pipeline_mode<synchronous>, transform_indices = @transform_14, window_bounds = array<i64: 1, 128>}, {pipeline_mode = #tpu.pipeline_mode<synchronous>, transform_indices = @transform_15, window_bounds = array<i64: 128, 128>}, {pipeline_mode = #tpu.pipeline_mode<synchronous>, transform_indices = @transform_16, window_bounds = array<i64: 1, 128>}, {pipeline_mode = #tpu.pipeline_mode<synchronous>, transform_indices = @transform_17, window_bounds = array<i64: 128, 256>}, {pipeline_mode = #tpu.pipeline_mode<synchronous>, transform_indices = @transform_18, window_bounds = array<i64: 1, 256>}, {pipeline_mode = #tpu.pipeline_mode<synchronous>, transform_indices = @transform_19, window_bounds = array<i64: 256, 784>}, {pipeline_mode = #tpu.pipeline_mode<synchronous>, transform_indices = @transform_20, window_bounds = array<i64: 1, 784>}, {transform_indices = @transform_21, window_bounds = array<i64: 8, 784>}]} {
    %c0 = arith.constant 0 : index
    %c0_0 = arith.constant 0 : index
    %0 = vector.load %arg1[%c0, %c0_0] : memref<8x784xf32, #tpu.memory_space<vmem>>, vector<8x784xf32>
    %c0_1 = arith.constant 0 : index
    %c0_2 = arith.constant 0 : index
    %1 = vector.load %arg2[%c0_1, %c0_2] : memref<784x256xbf16, #tpu.memory_space<vmem>>, vector<784x256xbf16>
    %c0_3 = arith.constant 0 : index
    %c0_4 = arith.constant 0 : index
    %2 = vector.load %arg3[%c0_3, %c0_4] : memref<1x256xf32, #tpu.memory_space<vmem>>, vector<1x256xf32>
    %3 = arith.truncf %0 : vector<8x784xf32> to vector<8x784xbf16>
    %cst = arith.constant dense<0.000000e+00> : vector<8x256xf32>
    %4 = tpu.matmul %3, %1, %cst {dimension_numbers = #tpu.dot_dimension_numbers<[1], [0], [0], [1], [0, 0, 1, 1], [], []>} : vector<8x784xbf16>, vector<784x256xbf16>, vector<8x256xf32> -> vector<8x256xf32>
    %5 = vector.broadcast %2 : vector<1x256xf32> to vector<8x256xf32>
    %6 = arith.addf %4, %5 : vector<8x256xf32>
    %cst_5 = arith.constant 0.000000e+00 : f32
    %7 = vector.broadcast %cst_5 : f32 to vector<8x256xf32>
    %8 = arith.maximumf %6, %7 : vector<8x256xf32>
    %c0_6 = arith.constant 0 : index
    %c0_7 = arith.constant 0 : index
    %9 = vector.load %arg4[%c0_6, %c0_7] : memref<256x128xbf16, #tpu.memory_space<vmem>>, vector<256x128xbf16>
    %c0_8 = arith.constant 0 : index
    %c0_9 = arith.constant 0 : index
    %10 = vector.load %arg5[%c0_8, %c0_9] : memref<1x128xf32, #tpu.memory_space<vmem>>, vector<1x128xf32>
    %11 = arith.truncf %8 : vector<8x256xf32> to vector<8x256xbf16>
    %cst_10 = arith.constant dense<0.000000e+00> : vector<8x128xf32>
    %12 = tpu.matmul %11, %9, %cst_10 {dimension_numbers = #tpu.dot_dimension_numbers<[1], [0], [0], [1], [0, 0, 1, 1], [], []>} : vector<8x256xbf16>, vector<256x128xbf16>, vector<8x128xf32> -> vector<8x128xf32>
    %13 = vector.broadcast %10 : vector<1x128xf32> to vector<8x128xf32>
    %14 = arith.addf %12, %13 : vector<8x128xf32>
    %cst_11 = arith.constant 0.000000e+00 : f32
    %15 = vector.broadcast %cst_11 : f32 to vector<8x128xf32>
    %16 = arith.maximumf %14, %15 : vector<8x128xf32>
    %c0_12 = arith.constant 0 : index
    %c0_13 = arith.constant 0 : index
    %17 = vector.load %arg6[%c0_12, %c0_13] : memref<128x128xbf16, #tpu.memory_space<vmem>>, vector<128x128xbf16>
    %c0_14 = arith.constant 0 : index
    %c0_15 = arith.constant 0 : index
    %18 = vector.load %arg7[%c0_14, %c0_15] : memref<1x128xf32, #tpu.memory_space<vmem>>, vector<1x128xf32>
    %19 = arith.truncf %16 : vector<8x128xf32> to vector<8x128xbf16>
    %cst_16 = arith.constant dense<0.000000e+00> : vector<8x128xf32>
    %20 = tpu.matmul %19, %17, %cst_16 {dimension_numbers = #tpu.dot_dimension_numbers<[1], [0], [0], [1], [0, 0, 1, 1], [], []>} : vector<8x128xbf16>, vector<128x128xbf16>, vector<8x128xf32> -> vector<8x128xf32>
    %21 = vector.broadcast %18 : vector<1x128xf32> to vector<8x128xf32>
    %22 = arith.addf %20, %21 : vector<8x128xf32>
    %cst_17 = arith.constant 0.000000e+00 : f32
    %23 = vector.broadcast %cst_17 : f32 to vector<8x128xf32>
    %24 = arith.maximumf %22, %23 : vector<8x128xf32>
    %c0_18 = arith.constant 0 : index
    %c0_19 = arith.constant 0 : index
    %25 = vector.load %arg8[%c0_18, %c0_19] : memref<128x128xbf16, #tpu.memory_space<vmem>>, vector<128x128xbf16>
    %c0_20 = arith.constant 0 : index
    %c0_21 = arith.constant 0 : index
    %26 = vector.load %arg9[%c0_20, %c0_21] : memref<1x128xf32, #tpu.memory_space<vmem>>, vector<1x128xf32>
    %27 = arith.truncf %24 : vector<8x128xf32> to vector<8x128xbf16>
    %cst_22 = arith.constant dense<0.000000e+00> : vector<8x128xf32>
    %28 = tpu.matmul %27, %25, %cst_22 {dimension_numbers = #tpu.dot_dimension_numbers<[1], [0], [0], [1], [0, 0, 1, 1], [], []>} : vector<8x128xbf16>, vector<128x128xbf16>, vector<8x128xf32> -> vector<8x128xf32>
    %29 = vector.broadcast %26 : vector<1x128xf32> to vector<8x128xf32>
    %30 = arith.addf %28, %29 : vector<8x128xf32>
    %cst_23 = arith.constant 0.000000e+00 : f32
    %31 = vector.broadcast %cst_23 : f32 to vector<8x128xf32>
    %32 = arith.maximumf %30, %31 : vector<8x128xf32>
    %c0_24 = arith.constant 0 : index
    %c0_25 = arith.constant 0 : index
    %33 = vector.load %arg10[%c0_24, %c0_25] : memref<128x128xbf16, #tpu.memory_space<vmem>>, vector<128x128xbf16>
    %c0_26 = arith.constant 0 : index
    %c0_27 = arith.constant 0 : index
    %34 = vector.load %arg11[%c0_26, %c0_27] : memref<1x128xf32, #tpu.memory_space<vmem>>, vector<1x128xf32>
    %35 = arith.truncf %32 : vector<8x128xf32> to vector<8x128xbf16>
    %cst_28 = arith.constant dense<0.000000e+00> : vector<8x128xf32>
    %36 = tpu.matmul %35, %33, %cst_28 {dimension_numbers = #tpu.dot_dimension_numbers<[1], [0], [0], [1], [0, 0, 1, 1], [], []>} : vector<8x128xbf16>, vector<128x128xbf16>, vector<8x128xf32> -> vector<8x128xf32>
    %37 = vector.broadcast %34 : vector<1x128xf32> to vector<8x128xf32>
    %38 = arith.addf %36, %37 : vector<8x128xf32>
    %cst_29 = arith.constant 0.000000e+00 : f32
    %39 = vector.broadcast %cst_29 : f32 to vector<8x128xf32>
    %40 = arith.maximumf %38, %39 : vector<8x128xf32>
    %c0_30 = arith.constant 0 : index
    %c0_31 = arith.constant 0 : index
    %41 = vector.load %arg12[%c0_30, %c0_31] : memref<128x128xbf16, #tpu.memory_space<vmem>>, vector<128x128xbf16>
    %c0_32 = arith.constant 0 : index
    %c0_33 = arith.constant 0 : index
    %42 = vector.load %arg13[%c0_32, %c0_33] : memref<1x128xf32, #tpu.memory_space<vmem>>, vector<1x128xf32>
    %43 = arith.truncf %40 : vector<8x128xf32> to vector<8x128xbf16>
    %cst_34 = arith.constant dense<0.000000e+00> : vector<8x128xf32>
    %44 = tpu.matmul %43, %41, %cst_34 {dimension_numbers = #tpu.dot_dimension_numbers<[1], [0], [0], [1], [0, 0, 1, 1], [], []>} : vector<8x128xbf16>, vector<128x128xbf16>, vector<8x128xf32> -> vector<8x128xf32>
    %45 = vector.broadcast %42 : vector<1x128xf32> to vector<8x128xf32>
    %46 = arith.addf %44, %45 : vector<8x128xf32>
    %cst_35 = arith.constant 0.000000e+00 : f32
    %47 = vector.broadcast %cst_35 : f32 to vector<8x128xf32>
    %48 = arith.maximumf %46, %47 : vector<8x128xf32>
    %c0_36 = arith.constant 0 : index
    %c0_37 = arith.constant 0 : index
    %49 = vector.load %arg14[%c0_36, %c0_37] : memref<128x128xbf16, #tpu.memory_space<vmem>>, vector<128x128xbf16>
    %c0_38 = arith.constant 0 : index
    %c0_39 = arith.constant 0 : index
    %50 = vector.load %arg15[%c0_38, %c0_39] : memref<1x128xf32, #tpu.memory_space<vmem>>, vector<1x128xf32>
    %51 = arith.truncf %48 : vector<8x128xf32> to vector<8x128xbf16>
    %cst_40 = arith.constant dense<0.000000e+00> : vector<8x128xf32>
    %52 = tpu.matmul %51, %49, %cst_40 {dimension_numbers = #tpu.dot_dimension_numbers<[1], [0], [0], [1], [0, 0, 1, 1], [], []>} : vector<8x128xbf16>, vector<128x128xbf16>, vector<8x128xf32> -> vector<8x128xf32>
    %53 = vector.broadcast %50 : vector<1x128xf32> to vector<8x128xf32>
    %54 = arith.addf %52, %53 : vector<8x128xf32>
    %cst_41 = arith.constant 0.000000e+00 : f32
    %55 = vector.broadcast %cst_41 : f32 to vector<8x128xf32>
    %56 = arith.maximumf %54, %55 : vector<8x128xf32>
    %c0_42 = arith.constant 0 : index
    %c0_43 = arith.constant 0 : index
    %57 = vector.load %arg16[%c0_42, %c0_43] : memref<128x128xbf16, #tpu.memory_space<vmem>>, vector<128x128xbf16>
    %c0_44 = arith.constant 0 : index
    %c0_45 = arith.constant 0 : index
    %58 = vector.load %arg17[%c0_44, %c0_45] : memref<1x128xf32, #tpu.memory_space<vmem>>, vector<1x128xf32>
    %59 = arith.truncf %56 : vector<8x128xf32> to vector<8x128xbf16>
    %cst_46 = arith.constant dense<0.000000e+00> : vector<8x128xf32>
    %60 = tpu.matmul %59, %57, %cst_46 {dimension_numbers = #tpu.dot_dimension_numbers<[1], [0], [0], [1], [0, 0, 1, 1], [], []>} : vector<8x128xbf16>, vector<128x128xbf16>, vector<8x128xf32> -> vector<8x128xf32>
    %61 = vector.broadcast %58 : vector<1x128xf32> to vector<8x128xf32>
    %62 = arith.addf %60, %61 : vector<8x128xf32>
    %cst_47 = arith.constant 0.000000e+00 : f32
    %63 = vector.broadcast %cst_47 : f32 to vector<8x128xf32>
    %64 = arith.maximumf %62, %63 : vector<8x128xf32>
    %c0_48 = arith.constant 0 : index
    %c0_49 = arith.constant 0 : index
    %65 = vector.load %arg18[%c0_48, %c0_49] : memref<128x256xbf16, #tpu.memory_space<vmem>>, vector<128x256xbf16>
    %c0_50 = arith.constant 0 : index
    %c0_51 = arith.constant 0 : index
    %66 = vector.load %arg19[%c0_50, %c0_51] : memref<1x256xf32, #tpu.memory_space<vmem>>, vector<1x256xf32>
    %67 = arith.truncf %64 : vector<8x128xf32> to vector<8x128xbf16>
    %cst_52 = arith.constant dense<0.000000e+00> : vector<8x256xf32>
    %68 = tpu.matmul %67, %65, %cst_52 {dimension_numbers = #tpu.dot_dimension_numbers<[1], [0], [0], [1], [0, 0, 1, 1], [], []>} : vector<8x128xbf16>, vector<128x256xbf16>, vector<8x256xf32> -> vector<8x256xf32>
    %69 = vector.broadcast %66 : vector<1x256xf32> to vector<8x256xf32>
    %70 = arith.addf %68, %69 : vector<8x256xf32>
    %cst_53 = arith.constant 0.000000e+00 : f32
    %71 = vector.broadcast %cst_53 : f32 to vector<8x256xf32>
    %72 = arith.maximumf %70, %71 : vector<8x256xf32>
    %c0_54 = arith.constant 0 : index
    %c0_55 = arith.constant 0 : index
    %73 = vector.load %arg20[%c0_54, %c0_55] : memref<256x784xbf16, #tpu.memory_space<vmem>>, vector<256x784xbf16>
    %c0_56 = arith.constant 0 : index
    %c0_57 = arith.constant 0 : index
    %74 = vector.load %arg21[%c0_56, %c0_57] : memref<1x784xf32, #tpu.memory_space<vmem>>, vector<1x784xf32>
    %75 = arith.truncf %72 : vector<8x256xf32> to vector<8x256xbf16>
    %cst_58 = arith.constant dense<0.000000e+00> : vector<8x784xf32>
    %76 = tpu.matmul %75, %73, %cst_58 {dimension_numbers = #tpu.dot_dimension_numbers<[1], [0], [0], [1], [0, 0, 1, 1], [], []>} : vector<8x256xbf16>, vector<256x784xbf16>, vector<8x784xf32> -> vector<8x784xf32>
    %77 = vector.broadcast %74 : vector<1x784xf32> to vector<8x784xf32>
    %78 = arith.addf %76, %77 : vector<8x784xf32>
    %cst_59 = arith.constant 0.000000e+00 : f32
    %79 = vector.broadcast %cst_59 : f32 to vector<8x784xf32>
    %80 = arith.maximumf %78, %79 : vector<8x784xf32>
    %c0_60 = arith.constant 0 : index
    %c0_61 = arith.constant 0 : index
    %81 = vector.load %arg22[%c0_60, %c0_61] : memref<8x784xf32, #tpu.memory_space<vmem>>, vector<8x784xf32>
    tpu.vector_store %arg22[%c0_60, %c0_61], %80 {strides = array<i32>} : memref<8x784xf32, #tpu.memory_space<vmem>>, vector<8x784xf32>,
    return
  }
  func.func @transform_0(%arg0: i32) -> (i32, i32) {
    %c0_i32 = arith.constant 0 : i32
    %c0_i32_0 = arith.constant 0 : i32
    return %arg0, %c0_i32 : i32, i32
  }
  func.func @transform_1(%arg0: i32) -> (i32, i32) {
    %c0_i32 = arith.constant 0 : i32
    %c0_i32_0 = arith.constant 0 : i32
    %c0_i32_1 = arith.constant 0 : i32
    return %c0_i32, %c0_i32_0 : i32, i32
  }
  func.func @transform_2(%arg0: i32) -> (i32, i32) {
    %c0_i32 = arith.constant 0 : i32
    %c0_i32_0 = arith.constant 0 : i32
    %c0_i32_1 = arith.constant 0 : i32
    return %c0_i32, %c0_i32_0 : i32, i32
  }
  func.func @transform_3(%arg0: i32) -> (i32, i32) {
    %c0_i32 = arith.constant 0 : i32
    %c0_i32_0 = arith.constant 0 : i32
    %c0_i32_1 = arith.constant 0 : i32
    return %c0_i32, %c0_i32_0 : i32, i32
  }
  func.func @transform_4(%arg0: i32) -> (i32, i32) {
    %c0_i32 = arith.constant 0 : i32
    %c0_i32_0 = arith.constant 0 : i32
    %c0_i32_1 = arith.constant 0 : i32
    return %c0_i32, %c0_i32_0 : i32, i32
  }
  func.func @transform_5(%arg0: i32) -> (i32, i32) {
    %c0_i32 = arith.constant 0 : i32
    %c0_i32_0 = arith.constant 0 : i32
    %c0_i32_1 = arith.constant 0 : i32
    return %c0_i32, %c0_i32_0 : i32, i32
  }
  func.func @transform_6(%arg0: i32) -> (i32, i32) {
    %c0_i32 = arith.constant 0 : i32
    %c0_i32_0 = arith.constant 0 : i32
    %c0_i32_1 = arith.constant 0 : i32
    return %c0_i32, %c0_i32_0 : i32, i32
  }
  func.func @transform_7(%arg0: i32) -> (i32, i32) {
    %c0_i32 = arith.constant 0 : i32
    %c0_i32_0 = arith.constant 0 : i32
    %c0_i32_1 = arith.constant 0 : i32
    return %c0_i32, %c0_i32_0 : i32, i32
  }
  func.func @transform_8(%arg0: i32) -> (i32, i32) {
    %c0_i32 = arith.constant 0 : i32
    %c0_i32_0 = arith.constant 0 : i32
    %c0_i32_1 = arith.constant 0 : i32
    return %c0_i32, %c0_i32_0 : i32, i32
  }
  func.func @transform_9(%arg0: i32) -> (i32, i32) {
    %c0_i32 = arith.constant 0 : i32
    %c0_i32_0 = arith.constant 0 : i32
    %c0_i32_1 = arith.constant 0 : i32
    return %c0_i32, %c0_i32_0 : i32, i32
  }
  func.func @transform_10(%arg0: i32) -> (i32, i32) {
    %c0_i32 = arith.constant 0 : i32
    %c0_i32_0 = arith.constant 0 : i32
    %c0_i32_1 = arith.constant 0 : i32
    return %c0_i32, %c0_i32_0 : i32, i32
  }
  func.func @transform_11(%arg0: i32) -> (i32, i32) {
    %c0_i32 = arith.constant 0 : i32
    %c0_i32_0 = arith.constant 0 : i32
    %c0_i32_1 = arith.constant 0 : i32
    return %c0_i32, %c0_i32_0 : i32, i32
  }
  func.func @transform_12(%arg0: i32) -> (i32, i32) {
    %c0_i32 = arith.constant 0 : i32
    %c0_i32_0 = arith.constant 0 : i32
    %c0_i32_1 = arith.constant 0 : i32
    return %c0_i32, %c0_i32_0 : i32, i32
  }
  func.func @transform_13(%arg0: i32) -> (i32, i32) {
    %c0_i32 = arith.constant 0 : i32
    %c0_i32_0 = arith.constant 0 : i32
    %c0_i32_1 = arith.constant 0 : i32
    return %c0_i32, %c0_i32_0 : i32, i32
  }
  func.func @transform_14(%arg0: i32) -> (i32, i32) {
    %c0_i32 = arith.constant 0 : i32
    %c0_i32_0 = arith.constant 0 : i32
    %c0_i32_1 = arith.constant 0 : i32
    return %c0_i32, %c0_i32_0 : i32, i32
  }
  func.func @transform_15(%arg0: i32) -> (i32, i32) {
    %c0_i32 = arith.constant 0 : i32
    %c0_i32_0 = arith.constant 0 : i32
    %c0_i32_1 = arith.constant 0 : i32
    return %c0_i32, %c0_i32_0 : i32, i32
  }
  func.func @transform_16(%arg0: i32) -> (i32, i32) {
    %c0_i32 = arith.constant 0 : i32
    %c0_i32_0 = arith.constant 0 : i32
    %c0_i32_1 = arith.constant 0 : i32
    return %c0_i32, %c0_i32_0 : i32, i32
  }
  func.func @transform_17(%arg0: i32) -> (i32, i32) {
    %c0_i32 = arith.constant 0 : i32
    %c0_i32_0 = arith.constant 0 : i32
    %c0_i32_1 = arith.constant 0 : i32
    return %c0_i32, %c0_i32_0 : i32, i32
  }
  func.func @transform_18(%arg0: i32) -> (i32, i32) {
    %c0_i32 = arith.constant 0 : i32
    %c0_i32_0 = arith.constant 0 : i32
    %c0_i32_1 = arith.constant 0 : i32
    return %c0_i32, %c0_i32_0 : i32, i32
  }
  func.func @transform_19(%arg0: i32) -> (i32, i32) {
    %c0_i32 = arith.constant 0 : i32
    %c0_i32_0 = arith.constant 0 : i32
    %c0_i32_1 = arith.constant 0 : i32
    return %c0_i32, %c0_i32_0 : i32, i32
  }
  func.func @transform_20(%arg0: i32) -> (i32, i32) {
    %c0_i32 = arith.constant 0 : i32
    %c0_i32_0 = arith.constant 0 : i32
    %c0_i32_1 = arith.constant 0 : i32
    return %c0_i32, %c0_i32_0 : i32, i32
  }
  func.func @transform_21(%arg0: i32) -> (i32, i32) {
    %c0_i32 = arith.constant 0 : i32
    %c0_i32_0 = arith.constant 0 : i32
    return %arg0, %c0_i32 : i32, i32
  }
}

</mosaic_0001>

<llo_original>
// kernel: autoencoder_forward.1
$region0: #{autoencoder_forward.1}
  #allocation0 [shape = 'u32[]', space=smem, size = 0x4, offset = 0x4, fixed_abs, tag = 'smem constant byte address 0x4 - core index']
  #allocation1 [shape = 'u32[144,128]{1,0:T(1,128)}', space=vmem, size = 0x12000, scoped, tag = 'internal scratch']
  %s0 = inlined_call_operand.vmem [shape: f32[8,784], index: 0, kind: input, shape index: {}]
  %s1 = inlined_call_operand.vmem [shape: bf16[784,256], index: 1, kind: input, shape index: {}]
  %s2 = inlined_call_operand.vmem [shape: f32[1,256], index: 2, kind: input, shape index: {}]
  %s3 = inlined_call_operand.vmem [shape: bf16[256,128], index: 3, kind: input, shape index: {}]
  %s4 = inlined_call_operand.vmem [shape: f32[1,128], index: 4, kind: input, shape index: {}]
  %s5 = inlined_call_operand.vmem [shape: bf16[128,128], index: 5, kind: input, shape index: {}]
  %s6 = inlined_call_operand.vmem [shape: f32[1,128], index: 6, kind: input, shape index: {}]
  %s7 = inlined_call_operand.vmem [shape: bf16[128,128], index: 7, kind: input, shape index: {}]
  %s8 = inlined_call_operand.vmem [shape: f32[1,128], index: 8, kind: input, shape index: {}]
  %s9 = inlined_call_operand.vmem [shape: bf16[128,128], index: 9, kind: input, shape index: {}]
  %s10 = inlined_call_operand.vmem [shape: f32[1,128], index: 10, kind: input, shape index: {}]
  %s11 = inlined_call_operand.vmem [shape: bf16[128,128], index: 11, kind: input, shape index: {}]
  %s12 = inlined_call_operand.vmem [shape: f32[1,128], index: 12, kind: input, shape index: {}]
  %s13 = inlined_call_operand.vmem [shape: bf16[128,128], index: 13, kind: input, shape index: {}]
  %s14 = inlined_call_operand.vmem [shape: f32[1,128], index: 14, kind: input, shape index: {}]
  %s15 = inlined_call_operand.vmem [shape: bf16[128,128], index: 15, kind: input, shape index: {}]
  %s16 = inlined_call_operand.vmem [shape: f32[1,128], index: 16, kind: input, shape index: {}]
  %s17 = inlined_call_operand.vmem [shape: bf16[128,256], index: 17, kind: input, shape index: {}]
  %s18 = inlined_call_operand.vmem [shape: f32[1,256], index: 18, kind: input, shape index: {}]
  %s19 = inlined_call_operand.vmem [shape: bf16[256,784], index: 19, kind: input, shape index: {}]
  %s20 = inlined_call_operand.vmem [shape: f32[1,784], index: 20, kind: input, shape index: {}]
  %s21 = inlined_call_operand.hbm [shape: f32[8,784], index: 21, kind: output, shape index: {}]
  %s22 = sld [smem:[#allocation0]]
  $region94: #{autoencoder_forward.1} parent=0
    _
  %s24 = ssub.s32 1, %s22
  %s25 = scalar_select 0, %s24, %s22
  $region1: #{autoencoder_forward.1} parent=0
    #allocation2 [shape = 'u8[28672]{0}', space=vmem, size = 0x7000, scoped, tag = 'output window, operand 0, single buffered']
    #allocation3 [shape = 's32[1]{0}', space=sflag, size = 0x4, scoped, tag = 'scoped memory for autoencoder_forward.1']
    %26 = vsyncpa [#allocation3], 0
    // Predicated region
    $region2: #{autoencoder_forward.1} parent=1 // pred_check
      _
    $region3: #{autoencoder_forward.1} parent=1 // pred_check_branch
      %28 = sbr.rel (0) target = $region5
    $region4: #{autoencoder_forward.1} parent=1 // pred_region
      _
    $region5: #{autoencoder_forward.1} parent=1 // pred_fallthru
      _
    // Predicated region
    $region6: #{autoencoder_forward.1} parent=1 // pred_check
      _
    $region7: #{autoencoder_forward.1} parent=1 // pred_check_branch
      %30 = sbr.rel (0) target = $region9
    $region8: #{autoencoder_forward.1} parent=1 // pred_region
      _
    $region9: #{autoencoder_forward.1} parent=1 // pred_fallthru
      _
    // Predicated region
    $region10: #{autoencoder_forward.1} parent=1 // pred_check
      _
    $region11: #{autoencoder_forward.1} parent=1 // pred_check_branch
      %32 = sbr.rel (0) target = $region13
    $region12: #{autoencoder_forward.1} parent=1 // pred_region
      _
    $region13: #{autoencoder_forward.1} parent=1 // pred_fallthru
      _
    // Predicated region
    $region14: #{autoencoder_forward.1} parent=1 // pred_check
      _
    $region15: #{autoencoder_forward.1} parent=1 // pred_check_branch
      %34 = sbr.rel (0) target = $region17
    $region16: #{autoencoder_forward.1} parent=1 // pred_region
      _
    $region17: #{autoencoder_forward.1} parent=1 // pred_fallthru
      _
    // Predicated region
    $region18: #{autoencoder_forward.1} parent=1 // pred_check
      _
    $region19: #{autoencoder_forward.1} parent=1 // pred_check_branch
      %36 = sbr.rel (0) target = $region21
    $region20: #{autoencoder_forward.1} parent=1 // pred_region
      _
    $region21: #{autoencoder_forward.1} parent=1 // pred_fallthru
      _
    // Predicated region
    $region22: #{autoencoder_forward.1} parent=1 // pred_check
      _
    $region23: #{autoencoder_forward.1} parent=1 // pred_check_branch
      %38 = sbr.rel (0) target = $region25
    $region24: #{autoencoder_forward.1} parent=1 // pred_region
      _
    $region25: #{autoencoder_forward.1} parent=1 // pred_fallthru
      _
    // Predicated region
    $region26: #{autoencoder_forward.1} parent=1 // pred_check
      _
    $region27: #{autoencoder_forward.1} parent=1 // pred_check_branch
      %40 = sbr.rel (0) target = $region29
    $region28: #{autoencoder_forward.1} parent=1 // pred_region
      _
    $region29: #{autoencoder_forward.1} parent=1 // pred_fallthru
      _
    // Predicated region
    $region30: #{autoencoder_forward.1} parent=1 // pred_check
      _
    $region31: #{autoencoder_forward.1} parent=1 // pred_check_branch
      %42 = sbr.rel (0) target = $region33
    $region32: #{autoencoder_forward.1} parent=1 // pred_region
      _
    $region33: #{autoencoder_forward.1} parent=1 // pred_fallthru
      _
    // Predicated region
    $region34: #{autoencoder_forward.1} parent=1 // pred_check
      _
    $region35: #{autoencoder_forward.1} parent=1 // pred_check_branch
      %44 = sbr.rel (0) target = $region37
    $region36: #{autoencoder_forward.1} parent=1 // pred_region
      _
    $region37: #{autoencoder_forward.1} parent=1 // pred_fallthru
      _
    // Predicated region
    $region38: #{autoencoder_forward.1} parent=1 // pred_check
      _
    $region39: #{autoencoder_forward.1} parent=1 // pred_check_branch
      %46 = sbr.rel (0) target = $region41
    $region40: #{autoencoder_forward.1} parent=1 // pred_region
      _
    $region41: #{autoencoder_forward.1} parent=1 // pred_fallthru
      _
    // Predicated region
    $region42: #{autoencoder_forward.1} parent=1 // pred_check
      _
    $region43: #{autoencoder_forward.1} parent=1 // pred_check_branch
      %48 = sbr.rel (0) target = $region45
    $region44: #{autoencoder_forward.1} parent=1 // pred_region
      _
    $region45: #{autoencoder_forward.1} parent=1 // pred_fallthru
      _
    // Predicated region
    $region46: #{autoencoder_forward.1} parent=1 // pred_check
      _
    $region47: #{autoencoder_forward.1} parent=1 // pred_check_branch
      %50 = sbr.rel (0) target = $region49
    $region48: #{autoencoder_forward.1} parent=1 // pred_region
      _
    $region49: #{autoencoder_forward.1} parent=1 // pred_fallthru
      _
    // Predicated region
    $region50: #{autoencoder_forward.1} parent=1 // pred_check
      _
    $region51: #{autoencoder_forward.1} parent=1 // pred_check_branch
      %52 = sbr.rel (0) target = $region53
    $region52: #{autoencoder_forward.1} parent=1 // pred_region
      _
    $region53: #{autoencoder_forward.1} parent=1 // pred_fallthru
      _
    // Predicated region
    $region54: #{autoencoder_forward.1} parent=1 // pred_check
      _
    $region55: #{autoencoder_forward.1} parent=1 // pred_check_branch
      %54 = sbr.rel (0) target = $region57
    $region56: #{autoencoder_forward.1} parent=1 // pred_region
      _
    $region57: #{autoencoder_forward.1} parent=1 // pred_fallthru
      _
    // Predicated region
    $region58: #{autoencoder_forward.1} parent=1 // pred_check
      _
    $region59: #{autoencoder_forward.1} parent=1 // pred_check_branch
      %56 = sbr.rel (0) target = $region61
    $region60: #{autoencoder_forward.1} parent=1 // pred_region
      _
    $region61: #{autoencoder_forward.1} parent=1 // pred_fallthru
      _
    // Predicated region
    $region62: #{autoencoder_forward.1} parent=1 // pred_check
      _
    $region63: #{autoencoder_forward.1} parent=1 // pred_check_branch
      %58 = sbr.rel (0) target = $region65
    $region64: #{autoencoder_forward.1} parent=1 // pred_region
      _
    $region65: #{autoencoder_forward.1} parent=1 // pred_fallthru
      _
    // Predicated region
    $region66: #{autoencoder_forward.1} parent=1 // pred_check
      _
    $region67: #{autoencoder_forward.1} parent=1 // pred_check_branch
      %60 = sbr.rel (0) target = $region69
    $region68: #{autoencoder_forward.1} parent=1 // pred_region
      _
    $region69: #{autoencoder_forward.1} parent=1 // pred_fallthru
      _
    // Predicated region
    $region70: #{autoencoder_forward.1} parent=1 // pred_check
      _
    $region71: #{autoencoder_forward.1} parent=1 // pred_check_branch
      %62 = sbr.rel (0) target = $region73
    $region72: #{autoencoder_forward.1} parent=1 // pred_region
      _
    $region73: #{autoencoder_forward.1} parent=1 // pred_fallthru
      _
    // Predicated region
    $region74: #{autoencoder_forward.1} parent=1 // pred_check
      _
    $region75: #{autoencoder_forward.1} parent=1 // pred_check_branch
      %64 = sbr.rel (0) target = $region77
    $region76: #{autoencoder_forward.1} parent=1 // pred_region
      _
    $region77: #{autoencoder_forward.1} parent=1 // pred_fallthru
      _
    // Predicated region
    $region78: #{autoencoder_forward.1} parent=1 // pred_check
      _
    $region79: #{autoencoder_forward.1} parent=1 // pred_check_branch
      %66 = sbr.rel (0) target = $region81
    $region80: #{autoencoder_forward.1} parent=1 // pred_region
      _
    $region81: #{autoencoder_forward.1} parent=1 // pred_fallthru
      _
    // Predicated region
    $region82: #{autoencoder_forward.1} parent=1 // pred_check
      _
    $region83: #{autoencoder_forward.1} parent=1 // pred_check_branch
      %68 = sbr.rel (0) target = $region85
    $region84: #{autoencoder_forward.1} parent=1 // pred_region
      _
    $region85: #{autoencoder_forward.1} parent=1 // pred_fallthru
      _
    %v70 = vld [vmem:[%s0] sm:$0xff]
    %v71 = vld [vmem:[%s0 + $0x8] sm:$0xff]
    %v72 = vld [vmem:[%s0 + $0x10] sm:$0xff]
    %v73 = vld [vmem:[%s0 + $0x18] sm:$0xff]
    %v74 = vld [vmem:[%s0 + $0x20] sm:$0xff]
    %v75 = vld [vmem:[%s0 + $0x28] sm:$0xff]
    %v76 = vld [vmem:[%s0 + $0x30] sm:$0xff]
    %v77 = vld [vmem:[%s1] sm:$0xff]
    %v78 = vld [vmem:[%s1 + $0x8] sm:$0xff]
    %v79 = vld [vmem:[%s1 + $0x10] sm:$0xff]
    %v80 = vld [vmem:[%s1 + $0x18] sm:$0xff]
    %v81 = vld [vmem:[%s1 + $0x20] sm:$0xff]
    %v82 = vld [vmem:[%s1 + $0x28] sm:$0xff]
    %v83 = vld [vmem:[%s1 + $0x30] sm:$0xff]
    %v84 = vld [vmem:[%s1 + $0x38] sm:$0xff]
    %v85 = vld [vmem:[%s1 + $0x40] sm:$0xff]
    %v86 = vld [vmem:[%s1 + $0x48] sm:$0xff]
    %v87 = vld [vmem:[%s1 + $0x50] sm:$0xff]
    %v88 = vld [vmem:[%s1 + $0x58] sm:$0xff]
    %v89 = vld [vmem:[%s1 + $0x60] sm:$0xff]
    %v90 = vld [vmem:[%s1 + $0x68] sm:$0xff]
    %v91 = vld [vmem:[%s1 + $0x70] sm:$0xff]
    %v92 = vld [vmem:[%s1 + $0x78] sm:$0xff]
    %v93 = vld [vmem:[%s1 + $0x80] sm:$0xff]
    %v94 = vld [vmem:[%s1 + $0x88] sm:$0xff]
    %v95 = vld [vmem:[%s1 + $0x90] sm:$0xff]
    %v96 = vld [vmem:[%s1 + $0x98] sm:$0xff]
    %v97 = vld [vmem:[%s1 + $0xa0] sm:$0xff]
    %v98 = vld [vmem:[%s1 + $0xa8] sm:$0xff]
    %v99 = vld [vmem:[%s1 + $0xb0] sm:$0xff]
    %v100 = vld [vmem:[%s1 + $0xb8] sm:$0xff]
    %v101 = vld [vmem:[%s1 + $0xc0] sm:$0xff]
    %v102 = vld [vmem:[%s1 + $0xc8] sm:$0xff]
    %v103 = vld [vmem:[%s1 + $0xd0] sm:$0xff]
    %v104 = vld [vmem:[%s1 + $0xd8] sm:$0xff]
    %v105 = vld [vmem:[%s1 + $0xe0] sm:$0xff]
    %v106 = vld [vmem:[%s1 + $0xe8] sm:$0xff]
    %v107 = vld [vmem:[%s1 + $0xf0] sm:$0xff]
    %v108 = vld [vmem:[%s1 + $0xf8] sm:$0xff]
    %v109 = vld [vmem:[%s1 + $0x100] sm:$0xff]
    %v110 = vld [vmem:[%s1 + $0x108] sm:$0xff]
    %v111 = vld [vmem:[%s1 + $0x110] sm:$0xff]
    %v112 = vld [vmem:[%s1 + $0x118] sm:$0xff]
    %v113 = vld [vmem:[%s1 + $0x120] sm:$0xff]
    %v114 = vld [vmem:[%s1 + $0x128] sm:$0xff]
    %v115 = vld [vmem:[%s1 + $0x130] sm:$0xff]
    %v116 = vld [vmem:[%s1 + $0x138] sm:$0xff]
    %v117 = vld [vmem:[%s1 + $0x140] sm:$0xff]
    %v118 = vld [vmem:[%s1 + $0x148] sm:$0xff]
    %v119 = vld [vmem:[%s1 + $0x150] sm:$0xff]
    %v120 = vld [vmem:[%s1 + $0x158] sm:$0xff]
    %v121 = vld [vmem:[%s1 + $0x160] sm:$0xff]
    %v122 = vld [vmem:[%s1 + $0x168] sm:$0xff]
    %v123 = vld [vmem:[%s1 + $0x170] sm:$0xff]
    %v124 = vld [vmem:[%s1 + $0x178] sm:$0xff]
    %v125 = vld [vmem:[%s1 + $0x180] sm:$0xff]
    %v126 = vld [vmem:[%s1 + $0x188] sm:$0xff]
    %v127 = vld [vmem:[%s1 + $0x190] sm:$0xff]
    %v128 = vld [vmem:[%s1 + $0x198] sm:$0xff]
    %v129 = vld [vmem:[%s1 + $0x1a0] sm:$0xff]
    %v130 = vld [vmem:[%s1 + $0x1a8] sm:$0xff]
    %v131 = vld [vmem:[%s1 + $0x1b0] sm:$0xff]
    %v132 = vld [vmem:[%s1 + $0x1b8] sm:$0xff]
    %v133 = vld [vmem:[%s1 + $0x1c0] sm:$0xff]
    %v134 = vld [vmem:[%s1 + $0x1c8] sm:$0xff]
    %v135 = vld [vmem:[%s1 + $0x1d0] sm:$0xff]
    %v136 = vld [vmem:[%s1 + $0x1d8] sm:$0xff]
    %v137 = vld [vmem:[%s1 + $0x1e0] sm:$0xff]
    %v138 = vld [vmem:[%s1 + $0x1e8] sm:$0xff]
    %v139 = vld [vmem:[%s1 + $0x1f0] sm:$0xff]
    %v140 = vld [vmem:[%s1 + $0x1f8] sm:$0xff]
    %v141 = vld [vmem:[%s1 + $0x200] sm:$0xff]
    %v142 = vld [vmem:[%s1 + $0x208] sm:$0xff]
    %v143 = vld [vmem:[%s1 + $0x210] sm:$0xff]
    %v144 = vld [vmem:[%s1 + $0x218] sm:$0xff]
    %v145 = vld [vmem:[%s1 + $0x220] sm:$0xff]
    %v146 = vld [vmem:[%s1 + $0x228] sm:$0xff]
    %v147 = vld [vmem:[%s1 + $0x230] sm:$0xff]
    %v148 = vld [vmem:[%s1 + $0x238] sm:$0xff]
    %v149 = vld [vmem:[%s1 + $0x240] sm:$0xff]
    %v150 = vld [vmem:[%s1 + $0x248] sm:$0xff]
    %v151 = vld [vmem:[%s1 + $0x250] sm:$0xff]
    %v152 = vld [vmem:[%s1 + $0x258] sm:$0xff]
    %v153 = vld [vmem:[%s1 + $0x260] sm:$0xff]
    %v154 = vld [vmem:[%s1 + $0x268] sm:$0xff]
    %v155 = vld [vmem:[%s1 + $0x270] sm:$0xff]
    %v156 = vld [vmem:[%s1 + $0x278] sm:$0xff]
    %v157 = vld [vmem:[%s1 + $0x280] sm:$0xff]
    %v158 = vld [vmem:[%s1 + $0x288] sm:$0xff]
    %v159 = vld [vmem:[%s1 + $0x290] sm:$0xff]
    %v160 = vld [vmem:[%s1 + $0x298] sm:$0xff]
    %v161 = vld [vmem:[%s1 + $0x2a0] sm:$0xff]
    %v162 = vld [vmem:[%s1 + $0x2a8] sm:$0xff]
    %v163 = vld [vmem:[%s1 + $0x2b0] sm:$0xff]
    %v164 = vld [vmem:[%s1 + $0x2b8] sm:$0xff]
    %v165 = vld [vmem:[%s1 + $0x2c0] sm:$0xff]
    %v166 = vld [vmem:[%s1 + $0x2c8] sm:$0xff]
    %v167 = vld [vmem:[%s1 + $0x2d0] sm:$0xff]
    %v168 = vld [vmem:[%s1 + $0x2d8] sm:$0xff]
    %v169 = vld [vmem:[%s1 + $0x2e0] sm:$0xff]
    %v170 = vld [vmem:[%s1 + $0x2e8] sm:$0xff]
    %v171 = vld [vmem:[%s1 + $0x2f0] sm:$0xff]
    %v172 = vld [vmem:[%s1 + $0x2f8] sm:$0xff]
    %v173 = vld [vmem:[%s1 + $0x300] sm:$0xff]
    %v174 = vld [vmem:[%s1 + $0x308] sm:$0xff]
    %v175 = vld [vmem:[%s2] sm:$0x3]
    %v176 = vpack.c.bf16 %v70, %v70
    %v177 = vpack.c.bf16 %v71, %v71
    %v178 = vpack.c.bf16 %v72, %v72
    %v179 = vpack.c.bf16 %v73, %v73
    %v180 = vpack.c.bf16 %v74, %v74
    %v181 = vpack.c.bf16 %v75, %v75
    %v182 = vpack.c.bf16 %v76, %v76
    %v184 = vlaneseq
    %v185 = vshrl.u32 %v184, 7
    %v186 = vsub.s32 0, %v185
    %v187 = vrot.slane %v175, %v186
    %v188 = vlaneseq
    %v189 = vshrl.u32 %v188, 7
    %v190 = vsub.s32 1, %v189
    %v191 = vrot.slane %v175, %v190
    %v292 = vunpack.c.l.b16 %v77
    %v293 = vunpack.c.h.b16 %v77
    %v294 = vunpack.c.l.b16 %v78
    %v295 = vunpack.c.h.b16 %v78
    %v296 = vunpack.c.l.b16 %v79
    %v297 = vunpack.c.h.b16 %v79
    %v298 = vunpack.c.l.b16 %v80
    %v299 = vunpack.c.h.b16 %v80
    %v300 = vunpack.c.l.b16 %v81
    %v301 = vunpack.c.h.b16 %v81
    %v302 = vunpack.c.l.b16 %v82
    %v303 = vunpack.c.h.b16 %v82
    %v304 = vunpack.c.l.b16 %v83
    %v305 = vunpack.c.h.b16 %v83
    %v306 = vunpack.c.l.b16 %v84
    %v307 = vunpack.c.h.b16 %v84
    %v308 = vunpack.c.l.b16 %v85
    %v309 = vunpack.c.h.b16 %v85
    %v310 = vunpack.c.l.b16 %v86
    %v311 = vunpack.c.h.b16 %v86
    %v312 = vunpack.c.l.b16 %v87
    %v313 = vunpack.c.h.b16 %v87
    %v314 = vunpack.c.l.b16 %v88
    %v315 = vunpack.c.h.b16 %v88
    %v316 = vunpack.c.l.b16 %v89
    %v317 = vunpack.c.h.b16 %v89
    %v318 = vunpack.c.l.b16 %v90
    %v319 = vunpack.c.h.b16 %v90
    %v320 = vunpack.c.l.b16 %v91
    %v321 = vunpack.c.h.b16 %v91
    %v322 = vunpack.c.l.b16 %v92
    %v323 = vunpack.c.h.b16 %v92
    %v324 = vunpack.c.l.b16 %v93
    %v325 = vunpack.c.h.b16 %v93
    %v326 = vunpack.c.l.b16 %v94
    %v327 = vunpack.c.h.b16 %v94
    %v328 = vunpack.c.l.b16 %v95
    %v329 = vunpack.c.h.b16 %v95
    %v330 = vunpack.c.l.b16 %v96
    %v331 = vunpack.c.h.b16 %v96
    %v332 = vunpack.c.l.b16 %v97
    %v333 = vunpack.c.h.b16 %v97
    %v334 = vunpack.c.l.b16 %v98
    %v335 = vunpack.c.h.b16 %v98
    %v336 = vunpack.c.l.b16 %v99
    %v337 = vunpack.c.h.b16 %v99
    %v338 = vunpack.c.l.b16 %v100
    %v339 = vunpack.c.h.b16 %v100
    %v340 = vunpack.c.l.b16 %v101
    %v341 = vunpack.c.h.b16 %v101
    %v342 = vunpack.c.l.b16 %v102
    %v343 = vunpack.c.h.b16 %v102
    %v344 = vunpack.c.l.b16 %v103
    %v345 = vunpack.c.h.b16 %v103
    %v346 = vunpack.c.l.b16 %v104
    %v347 = vunpack.c.h.b16 %v104
    %v348 = vunpack.c.l.b16 %v105
    %v349 = vunpack.c.h.b16 %v105
    %v350 = vunpack.c.l.b16 %v106
    %v351 = vunpack.c.h.b16 %v106
    %v352 = vunpack.c.l.b16 %v107
    %v353 = vunpack.c.h.b16 %v107
    %v354 = vunpack.c.l.b16 %v108
    %v355 = vunpack.c.h.b16 %v108
    %v356 = vunpack.c.l.b16 %v109
    %v357 = vunpack.c.h.b16 %v109
    %v358 = vunpack.c.l.b16 %v110
    %v359 = vunpack.c.h.b16 %v110
    %v360 = vunpack.c.l.b16 %v111
    %v361 = vunpack.c.h.b16 %v111
    %v362 = vunpack.c.l.b16 %v112
    %v363 = vunpack.c.h.b16 %v112
    %v364 = vunpack.c.l.b16 %v113
    %v365 = vunpack.c.h.b16 %v113
    %v366 = vunpack.c.l.b16 %v114
    %v367 = vunpack.c.h.b16 %v114
    %v368 = vunpack.c.l.b16 %v115
    %v369 = vunpack.c.h.b16 %v115
    %v370 = vunpack.c.l.b16 %v116
    %v371 = vunpack.c.h.b16 %v116
    %v372 = vunpack.c.l.b16 %v117
    %v373 = vunpack.c.h.b16 %v117
    %v374 = vunpack.c.l.b16 %v118
    %v375 = vunpack.c.h.b16 %v118
    %v376 = vunpack.c.l.b16 %v119
    %v377 = vunpack.c.h.b16 %v119
    %v378 = vunpack.c.l.b16 %v120
    %v379 = vunpack.c.h.b16 %v120
    %v380 = vunpack.c.l.b16 %v121
    %v381 = vunpack.c.h.b16 %v121
    %v382 = vunpack.c.l.b16 %v122
    %v383 = vunpack.c.h.b16 %v122
    %v384 = vunpack.c.l.b16 %v123
    %v385 = vunpack.c.h.b16 %v123
    %v386 = vunpack.c.l.b16 %v124
    %v387 = vunpack.c.h.b16 %v124
    %v388 = vunpack.c.l.b16 %v125
    %v389 = vunpack.c.h.b16 %v125
    %v390 = vunpack.c.l.b16 %v126
    %v391 = vunpack.c.h.b16 %v126
    %v392 = vunpack.c.l.b16 %v127
    %v393 = vunpack.c.h.b16 %v127
    %v394 = vunpack.c.l.b16 %v128
    %v395 = vunpack.c.h.b16 %v128
    %v396 = vunpack.c.l.b16 %v129
    %v397 = vunpack.c.h.b16 %v129
    %v398 = vunpack.c.l.b16 %v130
    %v399 = vunpack.c.h.b16 %v130
    %v400 = vunpack.c.l.b16 %v131
    %v401 = vunpack.c.h.b16 %v131
    %v402 = vunpack.c.l.b16 %v132
    %v403 = vunpack.c.h.b16 %v132
    %v404 = vunpack.c.l.b16 %v133
    %v405 = vunpack.c.h.b16 %v133
    %v406 = vunpack.c.l.b16 %v134
    %v407 = vunpack.c.h.b16 %v134
    %v408 = vunpack.c.l.b16 %v135
    %v409 = vunpack.c.h.b16 %v135
    %v410 = vunpack.c.l.b16 %v136
    %v411 = vunpack.c.h.b16 %v136
    %v412 = vunpack.c.l.b16 %v137
    %v413 = vunpack.c.h.b16 %v137
    %v414 = vunpack.c.l.b16 %v138
    %v415 = vunpack.c.h.b16 %v138
    %v416 = vunpack.c.l.b16 %v139
    %v417 = vunpack.c.h.b16 %v139
    %v418 = vunpack.c.l.b16 %v140
    %v419 = vunpack.c.h.b16 %v140
    %v420 = vunpack.c.l.b16 %v141
    %v421 = vunpack.c.h.b16 %v141
    %v422 = vunpack.c.l.b16 %v142
    %v423 = vunpack.c.h.b16 %v142
    %v424 = vunpack.c.l.b16 %v143
    %v425 = vunpack.c.h.b16 %v143
    %v426 = vunpack.c.l.b16 %v144
    %v427 = vunpack.c.h.b16 %v144
    %v428 = vunpack.c.l.b16 %v145
    %v429 = vunpack.c.h.b16 %v145
    %v430 = vunpack.c.l.b16 %v146
    %v431 = vunpack.c.h.b16 %v146
    %v432 = vunpack.c.l.b16 %v147
    %v433 = vunpack.c.h.b16 %v147
    %v434 = vunpack.c.l.b16 %v148
    %v435 = vunpack.c.h.b16 %v148
    %v436 = vunpack.c.l.b16 %v149
    %v437 = vunpack.c.h.b16 %v149
    %v438 = vunpack.c.l.b16 %v150
    %v439 = vunpack.c.h.b16 %v150
    %v440 = vunpack.c.l.b16 %v151
    %v441 = vunpack.c.h.b16 %v151
    %v442 = vunpack.c.l.b16 %v152
    %v443 = vunpack.c.h.b16 %v152
    %v444 = vunpack.c.l.b16 %v153
    %v445 = vunpack.c.h.b16 %v153
    %v446 = vunpack.c.l.b16 %v154
    %v447 = vunpack.c.h.b16 %v154
    %v448 = vunpack.c.l.b16 %v155
    %v449 = vunpack.c.h.b16 %v155
    %v450 = vunpack.c.l.b16 %v156
    %v451 = vunpack.c.h.b16 %v156
    %v452 = vunpack.c.l.b16 %v157
    %v453 = vunpack.c.h.b16 %v157
    %v454 = vunpack.c.l.b16 %v158
    %v455 = vunpack.c.h.b16 %v158
    %v456 = vunpack.c.l.b16 %v159
    %v457 = vunpack.c.h.b16 %v159
    %v458 = vunpack.c.l.b16 %v160
    %v459 = vunpack.c.h.b16 %v160
    %v460 = vunpack.c.l.b16 %v161
    %v461 = vunpack.c.h.b16 %v161
    %v462 = vunpack.c.l.b16 %v162
    %v463 = vunpack.c.h.b16 %v162
    %v464 = vunpack.c.l.b16 %v163
    %v465 = vunpack.c.h.b16 %v163
    %v466 = vunpack.c.l.b16 %v164
    %v467 = vunpack.c.h.b16 %v164
    %v468 = vunpack.c.l.b16 %v165
    %v469 = vunpack.c.h.b16 %v165
    %v470 = vunpack.c.l.b16 %v166
    %v471 = vunpack.c.h.b16 %v166
    %v472 = vunpack.c.l.b16 %v167
    %v473 = vunpack.c.h.b16 %v167
    %v474 = vunpack.c.l.b16 %v168
    %v475 = vunpack.c.h.b16 %v168
    %v476 = vunpack.c.l.b16 %v169
    %v477 = vunpack.c.h.b16 %v169
    %v478 = vunpack.c.l.b16 %v170
    %v479 = vunpack.c.h.b16 %v170
    %v480 = vunpack.c.l.b16 %v171
    %v481 = vunpack.c.h.b16 %v171
    %v482 = vunpack.c.l.b16 %v172
    %v483 = vunpack.c.h.b16 %v172
    %v484 = vunpack.c.l.b16 %v173
    %v485 = vunpack.c.h.b16 %v173
    %v486 = vunpack.c.l.b16 %v174
    %v487 = vunpack.c.h.b16 %v174
    %v488 = vpack.c.b16 %v294, %v292
    %v489 = vpack.c.b16 %v295, %v293
    %v490 = vpack.c.b16 %v298, %v296
    %v491 = vpack.c.b16 %v299, %v297
    %v492 = vpack.c.b16 %v302, %v300
    %v493 = vpack.c.b16 %v303, %v301
    %v494 = vpack.c.b16 %v306, %v304
    %v495 = vpack.c.b16 %v307, %v305
    %v496 = vpack.c.b16 %v310, %v308
    %v497 = vpack.c.b16 %v311, %v309
    %v498 = vpack.c.b16 %v314, %v312
    %v499 = vpack.c.b16 %v315, %v313
    %v500 = vpack.c.b16 %v318, %v316
    %v501 = vpack.c.b16 %v319, %v317
    %v502 = vpack.c.b16 %v322, %v320
    %v503 = vpack.c.b16 %v323, %v321
    %v504 = vpack.c.b16 %v326, %v324
    %v505 = vpack.c.b16 %v327, %v325
    %v506 = vpack.c.b16 %v330, %v328
    %v507 = vpack.c.b16 %v331, %v329
    %v508 = vpack.c.b16 %v334, %v332
    %v509 = vpack.c.b16 %v335, %v333
    %v510 = vpack.c.b16 %v338, %v336
    %v511 = vpack.c.b16 %v339, %v337
    %v512 = vpack.c.b16 %v342, %v340
    %v513 = vpack.c.b16 %v343, %v341
    %v514 = vpack.c.b16 %v346, %v344
    %v515 = vpack.c.b16 %v347, %v345
    %v516 = vpack.c.b16 %v350, %v348
    %v517 = vpack.c.b16 %v351, %v349
    %v518 = vpack.c.b16 %v354, %v352
    %v519 = vpack.c.b16 %v355, %v353
    %v520 = vpack.c.b16 %v358, %v356
    %v521 = vpack.c.b16 %v359, %v357
    %v522 = vpack.c.b16 %v362, %v360
    %v523 = vpack.c.b16 %v363, %v361
    %v524 = vpack.c.b16 %v366, %v364
    %v525 = vpack.c.b16 %v367, %v365
    %v526 = vpack.c.b16 %v370, %v368
    %v527 = vpack.c.b16 %v371, %v369
    %v528 = vpack.c.b16 %v374, %v372
    %v529 = vpack.c.b16 %v375, %v373
    %v530 = vpack.c.b16 %v378, %v376
    %v531 = vpack.c.b16 %v379, %v377
    %v532 = vpack.c.b16 %v382, %v380
    %v533 = vpack.c.b16 %v383, %v381
    %v534 = vpack.c.b16 %v386, %v384
    %v535 = vpack.c.b16 %v387, %v385
    %v536 = vpack.c.b16 %v390, %v388
    %v537 = vpack.c.b16 %v391, %v389
    %v538 = vpack.c.b16 %v394, %v392
    %v539 = vpack.c.b16 %v395, %v393
    %v540 = vpack.c.b16 %v398, %v396
    %v541 = vpack.c.b16 %v399, %v397
    %v542 = vpack.c.b16 %v402, %v400
    %v543 = vpack.c.b16 %v403, %v401
    %v544 = vpack.c.b16 %v406, %v404
    %v545 = vpack.c.b16 %v407, %v405
    %v546 = vpack.c.b16 %v410, %v408
    %v547 = vpack.c.b16 %v411, %v409
    %v548 = vpack.c.b16 %v414, %v412
    %v549 = vpack.c.b16 %v415, %v413
    %v550 = vpack.c.b16 %v418, %v416
    %v551 = vpack.c.b16 %v419, %v417
    %v552 = vpack.c.b16 %v422, %v420
    %v553 = vpack.c.b16 %v423, %v421
    %v554 = vpack.c.b16 %v426, %v424
    %v555 = vpack.c.b16 %v427, %v425
    %v556 = vpack.c.b16 %v430, %v428
    %v557 = vpack.c.b16 %v431, %v429
    %v558 = vpack.c.b16 %v434, %v432
    %v559 = vpack.c.b16 %v435, %v433
    %v560 = vpack.c.b16 %v438, %v436
    %v561 = vpack.c.b16 %v439, %v437
    %v562 = vpack.c.b16 %v442, %v440
    %v563 = vpack.c.b16 %v443, %v441
    %v564 = vpack.c.b16 %v446, %v444
    %v565 = vpack.c.b16 %v447, %v445
    %v566 = vpack.c.b16 %v450, %v448
    %v567 = vpack.c.b16 %v451, %v449
    %v568 = vpack.c.b16 %v454, %v452
    %v569 = vpack.c.b16 %v455, %v453
    %v570 = vpack.c.b16 %v458, %v456
    %v571 = vpack.c.b16 %v459, %v457
    %v572 = vpack.c.b16 %v462, %v460
    %v573 = vpack.c.b16 %v463, %v461
    %v574 = vpack.c.b16 %v466, %v464
    %v575 = vpack.c.b16 %v467, %v465
    %v576 = vpack.c.b16 %v470, %v468
    %v577 = vpack.c.b16 %v471, %v469
    %v578 = vpack.c.b16 %v474, %v472
    %v579 = vpack.c.b16 %v475, %v473
    %v580 = vpack.c.b16 %v478, %v476
    %v581 = vpack.c.b16 %v479, %v477
    %v582 = vpack.c.b16 %v482, %v480
    %v583 = vpack.c.b16 %v483, %v481
    %v584 = vpack.c.b16 %v486, %v484
    %v585 = vpack.c.b16 %v487, %v485
    %vm684 = vcmask 130048
    %v686 = vsel %vm684, %v182, 0
    %688 = vmatprep.subr.bf16.mxu0 %v503
    %689 = vmatpush1.bf16.msra.mxu0 %v502
    %690 = vmatprep.subr.bf16.mxu0 %v501
    %691 = vmatpush1.bf16.msra.mxu0 %v500
    %692 = vmatprep.subr.bf16.mxu0 %v499
    %693 = vmatpush1.bf16.msra.mxu0 %v498
    %694 = vmatprep.subr.bf16.mxu0 %v497
    %695 = vmatpush1.bf16.msra.mxu0 %v496
    %696 = vmatprep.subr.bf16.mxu0 %v495
    %697 = vmatpush1.bf16.msra.mxu0 %v494
    %698 = vmatprep.subr.bf16.mxu0 %v493
    %699 = vmatpush1.bf16.msra.mxu0 %v492
    %700 = vmatprep.subr.bf16.mxu0 %v491
    %701 = vmatpush1.bf16.msra.mxu0 %v490
    %702 = vmatprep.subr.bf16.mxu0 %v489
    %703 = vmatpush1.bf16.msra.mxu0 %v488
    %704 = vmatprep.subr.bf16.mxu0 %v519
    %705 = vmatpush2.bf16.msra.mxu0 %v518
    %706 = vmatprep.subr.bf16.mxu0 %v517
    %707 = vmatpush2.bf16.msra.mxu0 %v516
    %708 = vmatprep.subr.bf16.mxu0 %v515
    %709 = vmatpush2.bf16.msra.mxu0 %v514
    %710 = vmatprep.subr.bf16.mxu0 %v513
    %711 = vmatpush2.bf16.msra.mxu0 %v512
    %712 = vmatprep.subr.bf16.mxu0 %v511
    %713 = vmatpush2.bf16.msra.mxu0 %v510
    %714 = vmatprep.subr.bf16.mxu0 %v509
    %715 = vmatpush2.bf16.msra.mxu0 %v508
    %716 = vmatprep.subr.bf16.mxu0 %v507
    %717 = vmatpush2.bf16.msra.mxu0 %v506
    %718 = vmatprep.subr.bf16.mxu0 %v505
    %719 = vmatpush2.bf16.msra.mxu0 %v504
    %720 = vmatprep.mubr.bf16.mxu0 %v177
    %721 = vmatmul.mubr.bf16.gmra.mxu0 %v176
    %v722 = vpop.f32.mrf.mxu0
    %v723 = vadd.f32 %v187, %v722
    %v724 = vpop.f32.mrf.mxu0
    %v725 = vadd.f32 %v191, %v724
    %v726 = vpop.f32.mrf.mxu0
    %v727 = vpop.f32.mrf.mxu0
    %728 = vdwg.mxu0
    %729 = vmatprep.subr.bf16.mxu0 %v535
    %730 = vmatpush1.bf16.msra.mxu0 %v534
    %731 = vmatprep.subr.bf16.mxu0 %v533
    %732 = vmatpush1.bf16.msra.mxu0 %v532
    %733 = vmatprep.subr.bf16.mxu0 %v531
    %734 = vmatpush1.bf16.msra.mxu0 %v530
    %735 = vmatprep.subr.bf16.mxu0 %v529
    %736 = vmatpush1.bf16.msra.mxu0 %v528
    %737 = vmatprep.subr.bf16.mxu0 %v527
    %738 = vmatpush1.bf16.msra.mxu0 %v526
    %739 = vmatprep.subr.bf16.mxu0 %v525
    %740 = vmatpush1.bf16.msra.mxu0 %v524
    %741 = vmatprep.subr.bf16.mxu0 %v523
    %742 = vmatpush1.bf16.msra.mxu0 %v522
    %743 = vmatprep.subr.bf16.mxu0 %v521
    %744 = vmatpush1.bf16.msra.mxu0 %v520
    %745 = vmatprep.subr.bf16.mxu0 %v551
    %746 = vmatpush2.bf16.msra.mxu0 %v550
    %747 = vmatprep.subr.bf16.mxu0 %v549
    %748 = vmatpush2.bf16.msra.mxu0 %v548
    %749 = vmatprep.subr.bf16.mxu0 %v547
    %750 = vmatpush2.bf16.msra.mxu0 %v546
    %751 = vmatprep.subr.bf16.mxu0 %v545
    %752 = vmatpush2.bf16.msra.mxu0 %v544
    %753 = vmatprep.subr.bf16.mxu0 %v543
    %754 = vmatpush2.bf16.msra.mxu0 %v542
    %755 = vmatprep.subr.bf16.mxu0 %v541
    %756 = vmatpush2.bf16.msra.mxu0 %v540
    %757 = vmatprep.subr.bf16.mxu0 %v539
    %758 = vmatpush2.bf16.msra.mxu0 %v538
    %759 = vmatprep.subr.bf16.mxu0 %v537
    %760 = vmatpush2.bf16.msra.mxu0 %v536
    %761 = vmatprep.mubr.bf16.mxu0 %v179
    %762 = vmatmul.mubr.bf16.gmra.mxu0 %v178
    %v763 = vpop.f32.mrf.mxu0
    %v764 = vadd.f32 %v723, %v763
    %v765 = vpop.f32.mrf.mxu0
    %v766 = vadd.f32 %v725, %v765
    %v767 = vpop.f32.mrf.mxu0
    %v768 = vpop.f32.mrf.mxu0
    %769 = vdwg.mxu0
    %770 = vmatprep.subr.bf16.mxu0 %v567
    %771 = vmatpush1.bf16.msra.mxu0 %v566
    %772 = vmatprep.subr.bf16.mxu0 %v565
    %773 = vmatpush1.bf16.msra.mxu0 %v564
    %774 = vmatprep.subr.bf16.mxu0 %v563
    %775 = vmatpush1.bf16.msra.mxu0 %v562
    %776 = vmatprep.subr.bf16.mxu0 %v561
    %777 = vmatpush1.bf16.msra.mxu0 %v560
    %778 = vmatprep.subr.bf16.mxu0 %v559
    %779 = vmatpush1.bf16.msra.mxu0 %v558
    %780 = vmatprep.subr.bf16.mxu0 %v557
    %781 = vmatpush1.bf16.msra.mxu0 %v556
    %782 = vmatprep.subr.bf16.mxu0 %v555
    %783 = vmatpush1.bf16.msra.mxu0 %v554
    %784 = vmatprep.subr.bf16.mxu0 %v553
    %785 = vmatpush1.bf16.msra.mxu0 %v552
    %786 = vmatprep.subr.bf16.mxu0 %v583
    %787 = vmatpush2.bf16.msra.mxu0 %v582
    %788 = vmatprep.subr.bf16.mxu0 %v581
    %789 = vmatpush2.bf16.msra.mxu0 %v580
    %790 = vmatprep.subr.bf16.mxu0 %v579
    %791 = vmatpush2.bf16.msra.mxu0 %v578
    %792 = vmatprep.subr.bf16.mxu0 %v577
    %793 = vmatpush2.bf16.msra.mxu0 %v576
    %794 = vmatprep.subr.bf16.mxu0 %v575
    %795 = vmatpush2.bf16.msra.mxu0 %v574
    %796 = vmatprep.subr.bf16.mxu0 %v573
    %797 = vmatpush2.bf16.msra.mxu0 %v572
    %798 = vmatprep.subr.bf16.mxu0 %v571
    %799 = vmatpush2.bf16.msra.mxu0 %v570
    %800 = vmatprep.subr.bf16.mxu0 %v569
    %801 = vmatpush2.bf16.msra.mxu0 %v568
    %802 = vmatprep.mubr.bf16.mxu0 %v181
    %803 = vmatmul.mubr.bf16.gmra.mxu0 %v180
    %v804 = vpop.f32.mrf.mxu0
    %v805 = vadd.f32 %v764, %v804
    %v806 = vpop.f32.mrf.mxu0
    %v807 = vadd.f32 %v766, %v806
    %v808 = vpop.f32.mrf.mxu0
    %v809 = vpop.f32.mrf.mxu0
    %810 = vdwg.mxu0
    %811 = vmatprep.subr.bf16.mxu0 0
    %812 = vmatpush1.bf16.msra.mxu0 0
    %813 = vmatprep.subr.bf16.mxu0 0
    %814 = vmatpush1.bf16.msra.mxu0 0
    %815 = vmatprep.subr.bf16.mxu0 0
    %816 = vmatpush1.bf16.msra.mxu0 0
    %817 = vmatprep.subr.bf16.mxu0 0
    %818 = vmatpush1.bf16.msra.mxu0 0
    %819 = vmatprep.subr.bf16.mxu0 0
    %820 = vmatpush1.bf16.msra.mxu0 0
    %821 = vmatprep.subr.bf16.mxu0 0
    %822 = vmatpush1.bf16.msra.mxu0 0
    %823 = vmatprep.subr.bf16.mxu0 0
    %824 = vmatpush1.bf16.msra.mxu0 0
    %825 = vmatprep.subr.bf16.mxu0 %v585
    %826 = vmatpush1.bf16.msra.mxu0 %v584
    %827 = vmatprep.subr.bf16.mxu0 0
    %828 = vmatpush2.bf16.msra.mxu0 0
    %829 = vmatprep.subr.bf16.mxu0 0
    %830 = vmatpush2.bf16.msra.mxu0 0
    %831 = vmatprep.subr.bf16.mxu0 0
    %832 = vmatpush2.bf16.msra.mxu0 0
    %833 = vmatprep.subr.bf16.mxu0 0
    %834 = vmatpush2.bf16.msra.mxu0 0
    %835 = vmatprep.subr.bf16.mxu0 0
    %836 = vmatpush2.bf16.msra.mxu0 0
    %837 = vmatprep.subr.bf16.mxu0 0
    %838 = vmatpush2.bf16.msra.mxu0 0
    %839 = vmatprep.subr.bf16.mxu0 0
    %840 = vmatpush2.bf16.msra.mxu0 0
    %841 = vmatprep.subr.bf16.mxu0 0
    %842 = vmatpush2.bf16.msra.mxu0 0
    %843 = vmatprep.mubr.bf16.mxu0 0
    %844 = vmatmul.mubr.bf16.gmra.mxu0 %v686
    %v845 = vpop.f32.mrf.mxu0
    %v846 = vadd.f32 %v805, %v845
    %v847 = vpop.f32.mrf.mxu0
    %v848 = vadd.f32 %v807, %v847
    %v849 = vpop.f32.mrf.mxu0
    %v850 = vpop.f32.mrf.mxu0
    %851 = vdwg.mxu0
    %v852 = vmax.f32 %v846, 0.0
    %v853 = vmax.f32 %v848, 0.0
    %v854 = vld [vmem:[%s3] sm:$0xf]
    %v855 = vld [vmem:[%s3 + $0x4] sm:$0xf]
    %v856 = vld [vmem:[%s3 + $0x8] sm:$0xf]
    %v857 = vld [vmem:[%s3 + $0xc] sm:$0xf]
    %v858 = vld [vmem:[%s3 + $0x10] sm:$0xf]
    %v859 = vld [vmem:[%s3 + $0x14] sm:$0xf]
    %v860 = vld [vmem:[%s3 + $0x18] sm:$0xf]
    %v861 = vld [vmem:[%s3 + $0x1c] sm:$0xf]
    %v862 = vld [vmem:[%s3 + $0x20] sm:$0xf]
    %v863 = vld [vmem:[%s3 + $0x24] sm:$0xf]
    %v864 = vld [vmem:[%s3 + $0x28] sm:$0xf]
    %v865 = vld [vmem:[%s3 + $0x2c] sm:$0xf]
    %v866 = vld [vmem:[%s3 + $0x30] sm:$0xf]
    %v867 = vld [vmem:[%s3 + $0x34] sm:$0xf]
    %v868 = vld [vmem:[%s3 + $0x38] sm:$0xf]
    %v869 = vld [vmem:[%s3 + $0x3c] sm:$0xf]
    %v870 = vld [vmem:[%s3 + $0x40] sm:$0xf]
    %v871 = vld [vmem:[%s3 + $0x44] sm:$0xf]
    %v872 = vld [vmem:[%s3 + $0x48] sm:$0xf]
    %v873 = vld [vmem:[%s3 + $0x4c] sm:$0xf]
    %v874 = vld [vmem:[%s3 + $0x50] sm:$0xf]
    %v875 = vld [vmem:[%s3 + $0x54] sm:$0xf]
    %v876 = vld [vmem:[%s3 + $0x58] sm:$0xf]
    %v877 = vld [vmem:[%s3 + $0x5c] sm:$0xf]
    %v878 = vld [vmem:[%s3 + $0x60] sm:$0xf]
    %v879 = vld [vmem:[%s3 + $0x64] sm:$0xf]
    %v880 = vld [vmem:[%s3 + $0x68] sm:$0xf]
    %v881 = vld [vmem:[%s3 + $0x6c] sm:$0xf]
    %v882 = vld [vmem:[%s3 + $0x70] sm:$0xf]
    %v883 = vld [vmem:[%s3 + $0x74] sm:$0xf]
    %v884 = vld [vmem:[%s3 + $0x78] sm:$0xf]
    %v885 = vld [vmem:[%s3 + $0x7c] sm:$0xf]
    %v886 = vld [vmem:[%s4] sm:$0x1]
    %v887 = vpack.c.bf16 %v852, %v852
    %v888 = vpack.c.bf16 %v853, %v853
    %v890 = vlaneseq
    %v891 = vshrl.u32 %v890, 7
    %v892 = vsub.s32 0, %v891
    %v893 = vrot.slane %v886, %v892
    %v927 = vunpack.c.l.b16 %v854
    %v928 = vunpack.c.l.b16 %v855
    %v929 = vunpack.c.l.b16 %v856
    %v930 = vunpack.c.l.b16 %v857
    %v931 = vunpack.c.l.b16 %v858
    %v932 = vunpack.c.l.b16 %v859
    %v933 = vunpack.c.l.b16 %v860
    %v934 = vunpack.c.l.b16 %v861
    %v935 = vunpack.c.l.b16 %v862
    %v936 = vunpack.c.l.b16 %v863
    %v937 = vunpack.c.l.b16 %v864
    %v938 = vunpack.c.l.b16 %v865
    %v939 = vunpack.c.l.b16 %v866
    %v940 = vunpack.c.l.b16 %v867
    %v941 = vunpack.c.l.b16 %v868
    %v942 = vunpack.c.l.b16 %v869
    %v943 = vunpack.c.l.b16 %v870
    %v944 = vunpack.c.l.b16 %v871
    %v945 = vunpack.c.l.b16 %v872
    %v946 = vunpack.c.l.b16 %v873
    %v947 = vunpack.c.l.b16 %v874
    %v948 = vunpack.c.l.b16 %v875
    %v949 = vunpack.c.l.b16 %v876
    %v950 = vunpack.c.l.b16 %v877
    %v951 = vunpack.c.l.b16 %v878
    %v952 = vunpack.c.l.b16 %v879
    %v953 = vunpack.c.l.b16 %v880
    %v954 = vunpack.c.l.b16 %v881
    %v955 = vunpack.c.l.b16 %v882
    %v956 = vunpack.c.l.b16 %v883
    %v957 = vunpack.c.l.b16 %v884
    %v958 = vunpack.c.l.b16 %v885
    %v959 = vpack.c.b16 %v928, %v927
    %v960 = vpack.c.b16 %v930, %v929
    %v961 = vpack.c.b16 %v932, %v931
    %v962 = vpack.c.b16 %v934, %v933
    %v963 = vpack.c.b16 %v936, %v935
    %v964 = vpack.c.b16 %v938, %v937
    %v965 = vpack.c.b16 %v940, %v939
    %v966 = vpack.c.b16 %v942, %v941
    %v967 = vpack.c.b16 %v944, %v943
    %v968 = vpack.c.b16 %v946, %v945
    %v969 = vpack.c.b16 %v948, %v947
    %v970 = vpack.c.b16 %v950, %v949
    %v971 = vpack.c.b16 %v952, %v951
    %v972 = vpack.c.b16 %v954, %v953
    %v973 = vpack.c.b16 %v956, %v955
    %v974 = vpack.c.b16 %v958, %v957
    %991 = vmatprep.subr.bf16.mxu0 0
    %992 = vmatpush1.bf16.msra.mxu0 %v966
    %993 = vmatprep.subr.bf16.mxu0 0
    %994 = vmatpush1.bf16.msra.mxu0 %v965
    %995 = vmatprep.subr.bf16.mxu0 0
    %996 = vmatpush1.bf16.msra.mxu0 %v964
    %997 = vmatprep.subr.bf16.mxu0 0
    %998 = vmatpush1.bf16.msra.mxu0 %v963
    %999 = vmatprep.subr.bf16.mxu0 0
    %1000 = vmatpush1.bf16.msra.mxu0 %v962
    %1001 = vmatprep.subr.bf16.mxu0 0
    %1002 = vmatpush1.bf16.msra.mxu0 %v961
    %1003 = vmatprep.subr.bf16.mxu0 0
    %1004 = vmatpush1.bf16.msra.mxu0 %v960
    %1005 = vmatprep.subr.bf16.mxu0 0
    %1006 = vmatpush1.bf16.msra.mxu0 %v959
    %1007 = vmatprep.subr.bf16.mxu0 0
    %1008 = vmatpush2.bf16.msra.mxu0 %v974
    %1009 = vmatprep.subr.bf16.mxu0 0
    %1010 = vmatpush2.bf16.msra.mxu0 %v973
    %1011 = vmatprep.subr.bf16.mxu0 0
    %1012 = vmatpush2.bf16.msra.mxu0 %v972
    %1013 = vmatprep.subr.bf16.mxu0 0
    %1014 = vmatpush2.bf16.msra.mxu0 %v971
    %1015 = vmatprep.subr.bf16.mxu0 0
    %1016 = vmatpush2.bf16.msra.mxu0 %v970
    %1017 = vmatprep.subr.bf16.mxu0 0
    %1018 = vmatpush2.bf16.msra.mxu0 %v969
    %1019 = vmatprep.subr.bf16.mxu0 0
    %1020 = vmatpush2.bf16.msra.mxu0 %v968
    %1021 = vmatprep.subr.bf16.mxu0 0
    %1022 = vmatpush2.bf16.msra.mxu0 %v967
    %1023 = vmatprep.mubr.bf16.mxu0 %v888
    %1024 = vmatmul.mubr.bf16.gmra.mxu0 %v887
    %v1025 = vpop.f32.mrf.mxu0
    %v1026 = vadd.f32 %v893, %v1025
    %v1027 = vpop.f32.mrf.mxu0
    %v1028 = vpop.f32.mrf.mxu0
    %v1029 = vpop.f32.mrf.mxu0
    %1030 = vdwg.mxu0
    %v1031 = vmax.f32 %v1026, 0.0
    %v1032 = vld [vmem:[%s5] sm:$0xf]
    %v1033 = vld [vmem:[%s5 + $0x4] sm:$0xf]
    %v1034 = vld [vmem:[%s5 + $0x8] sm:$0xf]
    %v1035 = vld [vmem:[%s5 + $0xc] sm:$0xf]
    %v1036 = vld [vmem:[%s5 + $0x10] sm:$0xf]
    %v1037 = vld [vmem:[%s5 + $0x14] sm:$0xf]
    %v1038 = vld [vmem:[%s5 + $0x18] sm:$0xf]
    %v1039 = vld [vmem:[%s5 + $0x1c] sm:$0xf]
    %v1040 = vld [vmem:[%s5 + $0x20] sm:$0xf]
    %v1041 = vld [vmem:[%s5 + $0x24] sm:$0xf]
    %v1042 = vld [vmem:[%s5 + $0x28] sm:$0xf]
    %v1043 = vld [vmem:[%s5 + $0x2c] sm:$0xf]
    %v1044 = vld [vmem:[%s5 + $0x30] sm:$0xf]
    %v1045 = vld [vmem:[%s5 + $0x34] sm:$0xf]
    %v1046 = vld [vmem:[%s5 + $0x38] sm:$0xf]
    %v1047 = vld [vmem:[%s5 + $0x3c] sm:$0xf]
    %v1048 = vld [vmem:[%s6] sm:$0x1]
    %v1049 = vpack.c.bf16 %v1031, %v1031
    %v1051 = vlaneseq
    %v1052 = vshrl.u32 %v1051, 7
    %v1053 = vsub.s32 0, %v1052
    %v1054 = vrot.slane %v1048, %v1053
    %v1072 = vunpack.c.l.b16 %v1032
    %v1073 = vunpack.c.l.b16 %v1033
    %v1074 = vunpack.c.l.b16 %v1034
    %v1075 = vunpack.c.l.b16 %v1035
    %v1076 = vunpack.c.l.b16 %v1036
    %v1077 = vunpack.c.l.b16 %v1037
    %v1078 = vunpack.c.l.b16 %v1038
    %v1079 = vunpack.c.l.b16 %v1039
    %v1080 = vunpack.c.l.b16 %v1040
    %v1081 = vunpack.c.l.b16 %v1041
    %v1082 = vunpack.c.l.b16 %v1042
    %v1083 = vunpack.c.l.b16 %v1043
    %v1084 = vunpack.c.l.b16 %v1044
    %v1085 = vunpack.c.l.b16 %v1045
    %v1086 = vunpack.c.l.b16 %v1046
    %v1087 = vunpack.c.l.b16 %v1047
    %v1088 = vpack.c.b16 %v1073, %v1072
    %v1089 = vpack.c.b16 %v1075, %v1074
    %v1090 = vpack.c.b16 %v1077, %v1076
    %v1091 = vpack.c.b16 %v1079, %v1078
    %v1092 = vpack.c.b16 %v1081, %v1080
    %v1093 = vpack.c.b16 %v1083, %v1082
    %v1094 = vpack.c.b16 %v1085, %v1084
    %v1095 = vpack.c.b16 %v1087, %v1086
    %1104 = vmatprep.subr.bf16.mxu0 0
    %1105 = vmatpush1.bf16.msra.mxu0 %v1095
    %1106 = vmatprep.subr.bf16.mxu0 0
    %1107 = vmatpush1.bf16.msra.mxu0 %v1094
    %1108 = vmatprep.subr.bf16.mxu0 0
    %1109 = vmatpush1.bf16.msra.mxu0 %v1093
    %1110 = vmatprep.subr.bf16.mxu0 0
    %1111 = vmatpush1.bf16.msra.mxu0 %v1092
    %1112 = vmatprep.subr.bf16.mxu0 0
    %1113 = vmatpush1.bf16.msra.mxu0 %v1091
    %1114 = vmatprep.subr.bf16.mxu0 0
    %1115 = vmatpush1.bf16.msra.mxu0 %v1090
    %1116 = vmatprep.subr.bf16.mxu0 0
    %1117 = vmatpush1.bf16.msra.mxu0 %v1089
    %1118 = vmatprep.subr.bf16.mxu0 0
    %1119 = vmatpush1.bf16.msra.mxu0 %v1088
    %1120 = vmatprep.subr.bf16.mxu0 0
    %1121 = vmatpush2.bf16.msra.mxu0 0
    %1122 = vmatprep.subr.bf16.mxu0 0
    %1123 = vmatpush2.bf16.msra.mxu0 0
    %1124 = vmatprep.subr.bf16.mxu0 0
    %1125 = vmatpush2.bf16.msra.mxu0 0
    %1126 = vmatprep.subr.bf16.mxu0 0
    %1127 = vmatpush2.bf16.msra.mxu0 0
    %1128 = vmatprep.subr.bf16.mxu0 0
    %1129 = vmatpush2.bf16.msra.mxu0 0
    %1130 = vmatprep.subr.bf16.mxu0 0
    %1131 = vmatpush2.bf16.msra.mxu0 0
    %1132 = vmatprep.subr.bf16.mxu0 0
    %1133 = vmatpush2.bf16.msra.mxu0 0
    %1134 = vmatprep.subr.bf16.mxu0 0
    %1135 = vmatpush2.bf16.msra.mxu0 0
    %1136 = vmatprep.mubr.bf16.mxu0 0
    %1137 = vmatmul.mubr.bf16.gmra.mxu0 %v1049
    %v1138 = vpop.f32.mrf.mxu0
    %v1139 = vadd.f32 %v1054, %v1138
    %v1140 = vpop.f32.mrf.mxu0
    %v1141 = vpop.f32.mrf.mxu0
    %v1142 = vpop.f32.mrf.mxu0
    %1143 = vdwg.mxu0
    %v1144 = vmax.f32 %v1139, 0.0
    %v1145 = vld [vmem:[%s7] sm:$0xf]
    %v1146 = vld [vmem:[%s7 + $0x4] sm:$0xf]
    %v1147 = vld [vmem:[%s7 + $0x8] sm:$0xf]
    %v1148 = vld [vmem:[%s7 + $0xc] sm:$0xf]
    %v1149 = vld [vmem:[%s7 + $0x10] sm:$0xf]
    %v1150 = vld [vmem:[%s7 + $0x14] sm:$0xf]
    %v1151 = vld [vmem:[%s7 + $0x18] sm:$0xf]
    %v1152 = vld [vmem:[%s7 + $0x1c] sm:$0xf]
    %v1153 = vld [vmem:[%s7 + $0x20] sm:$0xf]
    %v1154 = vld [vmem:[%s7 + $0x24] sm:$0xf]
    %v1155 = vld [vmem:[%s7 + $0x28] sm:$0xf]
    %v1156 = vld [vmem:[%s7 + $0x2c] sm:$0xf]
    %v1157 = vld [vmem:[%s7 + $0x30] sm:$0xf]
    %v1158 = vld [vmem:[%s7 + $0x34] sm:$0xf]
    %v1159 = vld [vmem:[%s7 + $0x38] sm:$0xf]
    %v1160 = vld [vmem:[%s7 + $0x3c] sm:$0xf]
    %v1161 = vld [vmem:[%s8] sm:$0x1]
    %v1162 = vpack.c.bf16 %v1144, %v1144
    %v1164 = vlaneseq
    %v1165 = vshrl.u32 %v1164, 7
    %v1166 = vsub.s32 0, %v1165
    %v1167 = vrot.slane %v1161, %v1166
    %v1185 = vunpack.c.l.b16 %v1145
    %v1186 = vunpack.c.l.b16 %v1146
    %v1187 = vunpack.c.l.b16 %v1147
    %v1188 = vunpack.c.l.b16 %v1148
    %v1189 = vunpack.c.l.b16 %v1149
    %v1190 = vunpack.c.l.b16 %v1150
    %v1191 = vunpack.c.l.b16 %v1151
    %v1192 = vunpack.c.l.b16 %v1152
    %v1193 = vunpack.c.l.b16 %v1153
    %v1194 = vunpack.c.l.b16 %v1154
    %v1195 = vunpack.c.l.b16 %v1155
    %v1196 = vunpack.c.l.b16 %v1156
    %v1197 = vunpack.c.l.b16 %v1157
    %v1198 = vunpack.c.l.b16 %v1158
    %v1199 = vunpack.c.l.b16 %v1159
    %v1200 = vunpack.c.l.b16 %v1160
    %v1201 = vpack.c.b16 %v1186, %v1185
    %v1202 = vpack.c.b16 %v1188, %v1187
    %v1203 = vpack.c.b16 %v1190, %v1189
    %v1204 = vpack.c.b16 %v1192, %v1191
    %v1205 = vpack.c.b16 %v1194, %v1193
    %v1206 = vpack.c.b16 %v1196, %v1195
    %v1207 = vpack.c.b16 %v1198, %v1197
    %v1208 = vpack.c.b16 %v1200, %v1199
    %1217 = vmatprep.subr.bf16.mxu0 0
    %1218 = vmatpush1.bf16.msra.mxu0 %v1208
    %1219 = vmatprep.subr.bf16.mxu0 0
    %1220 = vmatpush1.bf16.msra.mxu0 %v1207
    %1221 = vmatprep.subr.bf16.mxu0 0
    %1222 = vmatpush1.bf16.msra.mxu0 %v1206
    %1223 = vmatprep.subr.bf16.mxu0 0
    %1224 = vmatpush1.bf16.msra.mxu0 %v1205
    %1225 = vmatprep.subr.bf16.mxu0 0
    %1226 = vmatpush1.bf16.msra.mxu0 %v1204
    %1227 = vmatprep.subr.bf16.mxu0 0
    %1228 = vmatpush1.bf16.msra.mxu0 %v1203
    %1229 = vmatprep.subr.bf16.mxu0 0
    %1230 = vmatpush1.bf16.msra.mxu0 %v1202
    %1231 = vmatprep.subr.bf16.mxu0 0
    %1232 = vmatpush1.bf16.msra.mxu0 %v1201
    %1233 = vmatprep.subr.bf16.mxu0 0
    %1234 = vmatpush2.bf16.msra.mxu0 0
    %1235 = vmatprep.subr.bf16.mxu0 0
    %1236 = vmatpush2.bf16.msra.mxu0 0
    %1237 = vmatprep.subr.bf16.mxu0 0
    %1238 = vmatpush2.bf16.msra.mxu0 0
    %1239 = vmatprep.subr.bf16.mxu0 0
    %1240 = vmatpush2.bf16.msra.mxu0 0
    %1241 = vmatprep.subr.bf16.mxu0 0
    %1242 = vmatpush2.bf16.msra.mxu0 0
    %1243 = vmatprep.subr.bf16.mxu0 0
    %1244 = vmatpush2.bf16.msra.mxu0 0
    %1245 = vmatprep.subr.bf16.mxu0 0
    %1246 = vmatpush2.bf16.msra.mxu0 0
    %1247 = vmatprep.subr.bf16.mxu0 0
    %1248 = vmatpush2.bf16.msra.mxu0 0
    %1249 = vmatprep.mubr.bf16.mxu0 0
    %1250 = vmatmul.mubr.bf16.gmra.mxu0 %v1162
    %v1251 = vpop.f32.mrf.mxu0
    %v1252 = vadd.f32 %v1167, %v1251
    %v1253 = vpop.f32.mrf.mxu0
    %v1254 = vpop.f32.mrf.mxu0
    %v1255 = vpop.f32.mrf.mxu0
    %1256 = vdwg.mxu0
    %v1257 = vmax.f32 %v1252, 0.0
    %v1258 = vld [vmem:[%s9] sm:$0xf]
    %v1259 = vld [vmem:[%s9 + $0x4] sm:$0xf]
    %v1260 = vld [vmem:[%s9 + $0x8] sm:$0xf]
    %v1261 = vld [vmem:[%s9 + $0xc] sm:$0xf]
    %v1262 = vld [vmem:[%s9 + $0x10] sm:$0xf]
    %v1263 = vld [vmem:[%s9 + $0x14] sm:$0xf]
    %v1264 = vld [vmem:[%s9 + $0x18] sm:$0xf]
    %v1265 = vld [vmem:[%s9 + $0x1c] sm:$0xf]
    %v1266 = vld [vmem:[%s9 + $0x20] sm:$0xf]
    %v1267 = vld [vmem:[%s9 + $0x24] sm:$0xf]
    %v1268 = vld [vmem:[%s9 + $0x28] sm:$0xf]
    %v1269 = vld [vmem:[%s9 + $0x2c] sm:$0xf]
    %v1270 = vld [vmem:[%s9 + $0x30] sm:$0xf]
    %v1271 = vld [vmem:[%s9 + $0x34] sm:$0xf]
    %v1272 = vld [vmem:[%s9 + $0x38] sm:$0xf]
    %v1273 = vld [vmem:[%s9 + $0x3c] sm:$0xf]
    %v1274 = vld [vmem:[%s10] sm:$0x1]
    %v1275 = vpack.c.bf16 %v1257, %v1257
    %v1277 = vlaneseq
    %v1278 = vshrl.u32 %v1277, 7
    %v1279 = vsub.s32 0, %v1278
    %v1280 = vrot.slane %v1274, %v1279
    %v1298 = vunpack.c.l.b16 %v1258
    %v1299 = vunpack.c.l.b16 %v1259
    %v1300 = vunpack.c.l.b16 %v1260
    %v1301 = vunpack.c.l.b16 %v1261
    %v1302 = vunpack.c.l.b16 %v1262
    %v1303 = vunpack.c.l.b16 %v1263
    %v1304 = vunpack.c.l.b16 %v1264
    %v1305 = vunpack.c.l.b16 %v1265
    %v1306 = vunpack.c.l.b16 %v1266
    %v1307 = vunpack.c.l.b16 %v1267
    %v1308 = vunpack.c.l.b16 %v1268
    %v1309 = vunpack.c.l.b16 %v1269
    %v1310 = vunpack.c.l.b16 %v1270
    %v1311 = vunpack.c.l.b16 %v1271
    %v1312 = vunpack.c.l.b16 %v1272
    %v1313 = vunpack.c.l.b16 %v1273
    %v1314 = vpack.c.b16 %v1299, %v1298
    %v1315 = vpack.c.b16 %v1301, %v1300
    %v1316 = vpack.c.b16 %v1303, %v1302
    %v1317 = vpack.c.b16 %v1305, %v1304
    %v1318 = vpack.c.b16 %v1307, %v1306
    %v1319 = vpack.c.b16 %v1309, %v1308
    %v1320 = vpack.c.b16 %v1311, %v1310
    %v1321 = vpack.c.b16 %v1313, %v1312
    %1330 = vmatprep.subr.bf16.mxu0 0
    %1331 = vmatpush1.bf16.msra.mxu0 %v1321
    %1332 = vmatprep.subr.bf16.mxu0 0
    %1333 = vmatpush1.bf16.msra.mxu0 %v1320
    %1334 = vmatprep.subr.bf16.mxu0 0
    %1335 = vmatpush1.bf16.msra.mxu0 %v1319
    %1336 = vmatprep.subr.bf16.mxu0 0
    %1337 = vmatpush1.bf16.msra.mxu0 %v1318
    %1338 = vmatprep.subr.bf16.mxu0 0
    %1339 = vmatpush1.bf16.msra.mxu0 %v1317
    %1340 = vmatprep.subr.bf16.mxu0 0
    %1341 = vmatpush1.bf16.msra.mxu0 %v1316
    %1342 = vmatprep.subr.bf16.mxu0 0
    %1343 = vmatpush1.bf16.msra.mxu0 %v1315
    %1344 = vmatprep.subr.bf16.mxu0 0
    %1345 = vmatpush1.bf16.msra.mxu0 %v1314
    %1346 = vmatprep.subr.bf16.mxu0 0
    %1347 = vmatpush2.bf16.msra.mxu0 0
    %1348 = vmatprep.subr.bf16.mxu0 0
    %1349 = vmatpush2.bf16.msra.mxu0 0
    %1350 = vmatprep.subr.bf16.mxu0 0
    %1351 = vmatpush2.bf16.msra.mxu0 0
    %1352 = vmatprep.subr.bf16.mxu0 0
    %1353 = vmatpush2.bf16.msra.mxu0 0
    %1354 = vmatprep.subr.bf16.mxu0 0
    %1355 = vmatpush2.bf16.msra.mxu0 0
    %1356 = vmatprep.subr.bf16.mxu0 0
    %1357 = vmatpush2.bf16.msra.mxu0 0
    %1358 = vmatprep.subr.bf16.mxu0 0
    %1359 = vmatpush2.bf16.msra.mxu0 0
    %1360 = vmatprep.subr.bf16.mxu0 0
    %1361 = vmatpush2.bf16.msra.mxu0 0
    %1362 = vmatprep.mubr.bf16.mxu0 0
    %1363 = vmatmul.mubr.bf16.gmra.mxu0 %v1275
    %v1364 = vpop.f32.mrf.mxu0
    %v1365 = vadd.f32 %v1280, %v1364
    %v1366 = vpop.f32.mrf.mxu0
    %v1367 = vpop.f32.mrf.mxu0
    %v1368 = vpop.f32.mrf.mxu0
    %1369 = vdwg.mxu0
    %v1370 = vmax.f32 %v1365, 0.0
    %v1371 = vld [vmem:[%s11] sm:$0xf]
    %v1372 = vld [vmem:[%s11 + $0x4] sm:$0xf]
    %v1373 = vld [vmem:[%s11 + $0x8] sm:$0xf]
    %v1374 = vld [vmem:[%s11 + $0xc] sm:$0xf]
    %v1375 = vld [vmem:[%s11 + $0x10] sm:$0xf]
    %v1376 = vld [vmem:[%s11 + $0x14] sm:$0xf]
    %v1377 = vld [vmem:[%s11 + $0x18] sm:$0xf]
    %v1378 = vld [vmem:[%s11 + $0x1c] sm:$0xf]
    %v1379 = vld [vmem:[%s11 + $0x20] sm:$0xf]
    %v1380 = vld [vmem:[%s11 + $0x24] sm:$0xf]
    %v1381 = vld [vmem:[%s11 + $0x28] sm:$0xf]
    %v1382 = vld [vmem:[%s11 + $0x2c] sm:$0xf]
    %v1383 = vld [vmem:[%s11 + $0x30] sm:$0xf]
    %v1384 = vld [vmem:[%s11 + $0x34] sm:$0xf]
    %v1385 = vld [vmem:[%s11 + $0x38] sm:$0xf]
    %v1386 = vld [vmem:[%s11 + $0x3c] sm:$0xf]
    %v1387 = vld [vmem:[%s12] sm:$0x1]
    %v1388 = vpack.c.bf16 %v1370, %v1370
    %v1390 = vlaneseq
    %v1391 = vshrl.u32 %v1390, 7
    %v1392 = vsub.s32 0, %v1391
    %v1393 = vrot.slane %v1387, %v1392
    %v1411 = vunpack.c.l.b16 %v1371
    %v1412 = vunpack.c.l.b16 %v1372
    %v1413 = vunpack.c.l.b16 %v1373
    %v1414 = vunpack.c.l.b16 %v1374
    %v1415 = vunpack.c.l.b16 %v1375
    %v1416 = vunpack.c.l.b16 %v1376
    %v1417 = vunpack.c.l.b16 %v1377
    %v1418 = vunpack.c.l.b16 %v1378
    %v1419 = vunpack.c.l.b16 %v1379
    %v1420 = vunpack.c.l.b16 %v1380
    %v1421 = vunpack.c.l.b16 %v1381
    %v1422 = vunpack.c.l.b16 %v1382
    %v1423 = vunpack.c.l.b16 %v1383
    %v1424 = vunpack.c.l.b16 %v1384
    %v1425 = vunpack.c.l.b16 %v1385
    %v1426 = vunpack.c.l.b16 %v1386
    %v1427 = vpack.c.b16 %v1412, %v1411
    %v1428 = vpack.c.b16 %v1414, %v1413
    %v1429 = vpack.c.b16 %v1416, %v1415
    %v1430 = vpack.c.b16 %v1418, %v1417
    %v1431 = vpack.c.b16 %v1420, %v1419
    %v1432 = vpack.c.b16 %v1422, %v1421
    %v1433 = vpack.c.b16 %v1424, %v1423
    %v1434 = vpack.c.b16 %v1426, %v1425
    %1443 = vmatprep.subr.bf16.mxu0 0
    %1444 = vmatpush1.bf16.msra.mxu0 %v1434
    %1445 = vmatprep.subr.bf16.mxu0 0
    %1446 = vmatpush1.bf16.msra.mxu0 %v1433
    %1447 = vmatprep.subr.bf16.mxu0 0
    %1448 = vmatpush1.bf16.msra.mxu0 %v1432
    %1449 = vmatprep.subr.bf16.mxu0 0
    %1450 = vmatpush1.bf16.msra.mxu0 %v1431
    %1451 = vmatprep.subr.bf16.mxu0 0
    %1452 = vmatpush1.bf16.msra.mxu0 %v1430
    %1453 = vmatprep.subr.bf16.mxu0 0
    %1454 = vmatpush1.bf16.msra.mxu0 %v1429
    %1455 = vmatprep.subr.bf16.mxu0 0
    %1456 = vmatpush1.bf16.msra.mxu0 %v1428
    %1457 = vmatprep.subr.bf16.mxu0 0
    %1458 = vmatpush1.bf16.msra.mxu0 %v1427
    %1459 = vmatprep.subr.bf16.mxu0 0
    %1460 = vmatpush2.bf16.msra.mxu0 0
    %1461 = vmatprep.subr.bf16.mxu0 0
    %1462 = vmatpush2.bf16.msra.mxu0 0
    %1463 = vmatprep.subr.bf16.mxu0 0
    %1464 = vmatpush2.bf16.msra.mxu0 0
    %1465 = vmatprep.subr.bf16.mxu0 0
    %1466 = vmatpush2.bf16.msra.mxu0 0
    %1467 = vmatprep.subr.bf16.mxu0 0
    %1468 = vmatpush2.bf16.msra.mxu0 0
    %1469 = vmatprep.subr.bf16.mxu0 0
    %1470 = vmatpush2.bf16.msra.mxu0 0
    %1471 = vmatprep.subr.bf16.mxu0 0
    %1472 = vmatpush2.bf16.msra.mxu0 0
    %1473 = vmatprep.subr.bf16.mxu0 0
    %1474 = vmatpush2.bf16.msra.mxu0 0
    %1475 = vmatprep.mubr.bf16.mxu0 0
    %1476 = vmatmul.mubr.bf16.gmra.mxu0 %v1388
    %v1477 = vpop.f32.mrf.mxu0
    %v1478 = vadd.f32 %v1393, %v1477
    %v1479 = vpop.f32.mrf.mxu0
    %v1480 = vpop.f32.mrf.mxu0
    %v1481 = vpop.f32.mrf.mxu0
    %1482 = vdwg.mxu0
    %v1483 = vmax.f32 %v1478, 0.0
    %v1484 = vld [vmem:[%s13] sm:$0xf]
    %v1485 = vld [vmem:[%s13 + $0x4] sm:$0xf]
    %v1486 = vld [vmem:[%s13 + $0x8] sm:$0xf]
    %v1487 = vld [vmem:[%s13 + $0xc] sm:$0xf]
    %v1488 = vld [vmem:[%s13 + $0x10] sm:$0xf]
    %v1489 = vld [vmem:[%s13 + $0x14] sm:$0xf]
    %v1490 = vld [vmem:[%s13 + $0x18] sm:$0xf]
    %v1491 = vld [vmem:[%s13 + $0x1c] sm:$0xf]
    %v1492 = vld [vmem:[%s13 + $0x20] sm:$0xf]
    %v1493 = vld [vmem:[%s13 + $0x24] sm:$0xf]
    %v1494 = vld [vmem:[%s13 + $0x28] sm:$0xf]
    %v1495 = vld [vmem:[%s13 + $0x2c] sm:$0xf]
    %v1496 = vld [vmem:[%s13 + $0x30] sm:$0xf]
    %v1497 = vld [vmem:[%s13 + $0x34] sm:$0xf]
    %v1498 = vld [vmem:[%s13 + $0x38] sm:$0xf]
    %v1499 = vld [vmem:[%s13 + $0x3c] sm:$0xf]
    %v1500 = vld [vmem:[%s14] sm:$0x1]
    %v1501 = vpack.c.bf16 %v1483, %v1483
    %v1503 = vlaneseq
    %v1504 = vshrl.u32 %v1503, 7
    %v1505 = vsub.s32 0, %v1504
    %v1506 = vrot.slane %v1500, %v1505
    %v1524 = vunpack.c.l.b16 %v1484
    %v1525 = vunpack.c.l.b16 %v1485
    %v1526 = vunpack.c.l.b16 %v1486
    %v1527 = vunpack.c.l.b16 %v1487
    %v1528 = vunpack.c.l.b16 %v1488
    %v1529 = vunpack.c.l.b16 %v1489
    %v1530 = vunpack.c.l.b16 %v1490
    %v1531 = vunpack.c.l.b16 %v1491
    %v1532 = vunpack.c.l.b16 %v1492
    %v1533 = vunpack.c.l.b16 %v1493
    %v1534 = vunpack.c.l.b16 %v1494
    %v1535 = vunpack.c.l.b16 %v1495
    %v1536 = vunpack.c.l.b16 %v1496
    %v1537 = vunpack.c.l.b16 %v1497
    %v1538 = vunpack.c.l.b16 %v1498
    %v1539 = vunpack.c.l.b16 %v1499
    %v1540 = vpack.c.b16 %v1525, %v1524
    %v1541 = vpack.c.b16 %v1527, %v1526
    %v1542 = vpack.c.b16 %v1529, %v1528
    %v1543 = vpack.c.b16 %v1531, %v1530
    %v1544 = vpack.c.b16 %v1533, %v1532
    %v1545 = vpack.c.b16 %v1535, %v1534
    %v1546 = vpack.c.b16 %v1537, %v1536
    %v1547 = vpack.c.b16 %v1539, %v1538
    %1556 = vmatprep.subr.bf16.mxu0 0
    %1557 = vmatpush1.bf16.msra.mxu0 %v1547
    %1558 = vmatprep.subr.bf16.mxu0 0
    %1559 = vmatpush1.bf16.msra.mxu0 %v1546
    %1560 = vmatprep.subr.bf16.mxu0 0
    %1561 = vmatpush1.bf16.msra.mxu0 %v1545
    %1562 = vmatprep.subr.bf16.mxu0 0
    %1563 = vmatpush1.bf16.msra.mxu0 %v1544
    %1564 = vmatprep.subr.bf16.mxu0 0
    %1565 = vmatpush1.bf16.msra.mxu0 %v1543
    %1566 = vmatprep.subr.bf16.mxu0 0
    %1567 = vmatpush1.bf16.msra.mxu0 %v1542
    %1568 = vmatprep.subr.bf16.mxu0 0
    %1569 = vmatpush1.bf16.msra.mxu0 %v1541
    %1570 = vmatprep.subr.bf16.mxu0 0
    %1571 = vmatpush1.bf16.msra.mxu0 %v1540
    %1572 = vmatprep.subr.bf16.mxu0 0
    %1573 = vmatpush2.bf16.msra.mxu0 0
    %1574 = vmatprep.subr.bf16.mxu0 0
    %1575 = vmatpush2.bf16.msra.mxu0 0
    %1576 = vmatprep.subr.bf16.mxu0 0
    %1577 = vmatpush2.bf16.msra.mxu0 0
    %1578 = vmatprep.subr.bf16.mxu0 0
    %1579 = vmatpush2.bf16.msra.mxu0 0
    %1580 = vmatprep.subr.bf16.mxu0 0
    %1581 = vmatpush2.bf16.msra.mxu0 0
    %1582 = vmatprep.subr.bf16.mxu0 0
    %1583 = vmatpush2.bf16.msra.mxu0 0
    %1584 = vmatprep.subr.bf16.mxu0 0
    %1585 = vmatpush2.bf16.msra.mxu0 0
    %1586 = vmatprep.subr.bf16.mxu0 0
    %1587 = vmatpush2.bf16.msra.mxu0 0
    %1588 = vmatprep.mubr.bf16.mxu0 0
    %1589 = vmatmul.mubr.bf16.gmra.mxu0 %v1501
    %v1590 = vpop.f32.mrf.mxu0
    %v1591 = vadd.f32 %v1506, %v1590
    %v1592 = vpop.f32.mrf.mxu0
    %v1593 = vpop.f32.mrf.mxu0
    %v1594 = vpop.f32.mrf.mxu0
    %1595 = vdwg.mxu0
    %v1596 = vmax.f32 %v1591, 0.0
    %v1597 = vld [vmem:[%s15] sm:$0xf]
    %v1598 = vld [vmem:[%s15 + $0x4] sm:$0xf]
    %v1599 = vld [vmem:[%s15 + $0x8] sm:$0xf]
    %v1600 = vld [vmem:[%s15 + $0xc] sm:$0xf]
    %v1601 = vld [vmem:[%s15 + $0x10] sm:$0xf]
    %v1602 = vld [vmem:[%s15 + $0x14] sm:$0xf]
    %v1603 = vld [vmem:[%s15 + $0x18] sm:$0xf]
    %v1604 = vld [vmem:[%s15 + $0x1c] sm:$0xf]
    %v1605 = vld [vmem:[%s15 + $0x20] sm:$0xf]
    %v1606 = vld [vmem:[%s15 + $0x24] sm:$0xf]
    %v1607 = vld [vmem:[%s15 + $0x28] sm:$0xf]
    %v1608 = vld [vmem:[%s15 + $0x2c] sm:$0xf]
    %v1609 = vld [vmem:[%s15 + $0x30] sm:$0xf]
    %v1610 = vld [vmem:[%s15 + $0x34] sm:$0xf]
    %v1611 = vld [vmem:[%s15 + $0x38] sm:$0xf]
    %v1612 = vld [vmem:[%s15 + $0x3c] sm:$0xf]
    %v1613 = vld [vmem:[%s16] sm:$0x1]
    %v1614 = vpack.c.bf16 %v1596, %v1596
    %v1616 = vlaneseq
    %v1617 = vshrl.u32 %v1616, 7
    %v1618 = vsub.s32 0, %v1617
    %v1619 = vrot.slane %v1613, %v1618
    %v1637 = vunpack.c.l.b16 %v1597
    %v1638 = vunpack.c.l.b16 %v1598
    %v1639 = vunpack.c.l.b16 %v1599
    %v1640 = vunpack.c.l.b16 %v1600
    %v1641 = vunpack.c.l.b16 %v1601
    %v1642 = vunpack.c.l.b16 %v1602
    %v1643 = vunpack.c.l.b16 %v1603
    %v1644 = vunpack.c.l.b16 %v1604
    %v1645 = vunpack.c.l.b16 %v1605
    %v1646 = vunpack.c.l.b16 %v1606
    %v1647 = vunpack.c.l.b16 %v1607
    %v1648 = vunpack.c.l.b16 %v1608
    %v1649 = vunpack.c.l.b16 %v1609
    %v1650 = vunpack.c.l.b16 %v1610
    %v1651 = vunpack.c.l.b16 %v1611
    %v1652 = vunpack.c.l.b16 %v1612
    %v1653 = vpack.c.b16 %v1638, %v1637
    %v1654 = vpack.c.b16 %v1640, %v1639
    %v1655 = vpack.c.b16 %v1642, %v1641
    %v1656 = vpack.c.b16 %v1644, %v1643
    %v1657 = vpack.c.b16 %v1646, %v1645
    %v1658 = vpack.c.b16 %v1648, %v1647
    %v1659 = vpack.c.b16 %v1650, %v1649
    %v1660 = vpack.c.b16 %v1652, %v1651
    %1669 = vmatprep.subr.bf16.mxu0 0
    %1670 = vmatpush1.bf16.msra.mxu0 %v1660
    %1671 = vmatprep.subr.bf16.mxu0 0
    %1672 = vmatpush1.bf16.msra.mxu0 %v1659
    %1673 = vmatprep.subr.bf16.mxu0 0
    %1674 = vmatpush1.bf16.msra.mxu0 %v1658
    %1675 = vmatprep.subr.bf16.mxu0 0
    %1676 = vmatpush1.bf16.msra.mxu0 %v1657
    %1677 = vmatprep.subr.bf16.mxu0 0
    %1678 = vmatpush1.bf16.msra.mxu0 %v1656
    %1679 = vmatprep.subr.bf16.mxu0 0
    %1680 = vmatpush1.bf16.msra.mxu0 %v1655
    %1681 = vmatprep.subr.bf16.mxu0 0
    %1682 = vmatpush1.bf16.msra.mxu0 %v1654
    %1683 = vmatprep.subr.bf16.mxu0 0
    %1684 = vmatpush1.bf16.msra.mxu0 %v1653
    %1685 = vmatprep.subr.bf16.mxu0 0
    %1686 = vmatpush2.bf16.msra.mxu0 0
    %1687 = vmatprep.subr.bf16.mxu0 0
    %1688 = vmatpush2.bf16.msra.mxu0 0
    %1689 = vmatprep.subr.bf16.mxu0 0
    %1690 = vmatpush2.bf16.msra.mxu0 0
    %1691 = vmatprep.subr.bf16.mxu0 0
    %1692 = vmatpush2.bf16.msra.mxu0 0
    %1693 = vmatprep.subr.bf16.mxu0 0
    %1694 = vmatpush2.bf16.msra.mxu0 0
    %1695 = vmatprep.subr.bf16.mxu0 0
    %1696 = vmatpush2.bf16.msra.mxu0 0
    %1697 = vmatprep.subr.bf16.mxu0 0
    %1698 = vmatpush2.bf16.msra.mxu0 0
    %1699 = vmatprep.subr.bf16.mxu0 0
    %1700 = vmatpush2.bf16.msra.mxu0 0
    %1701 = vmatprep.mubr.bf16.mxu0 0
    %1702 = vmatmul.mubr.bf16.gmra.mxu0 %v1614
    %v1703 = vpop.f32.mrf.mxu0
    %v1704 = vadd.f32 %v1619, %v1703
    %v1705 = vpop.f32.mrf.mxu0
    %v1706 = vpop.f32.mrf.mxu0
    %v1707 = vpop.f32.mrf.mxu0
    %1708 = vdwg.mxu0
    %v1709 = vmax.f32 %v1704, 0.0
    %v1710 = vld [vmem:[%s17] sm:$0xff]
    %v1711 = vld [vmem:[%s17 + $0x8] sm:$0xff]
    %v1712 = vld [vmem:[%s17 + $0x10] sm:$0xff]
    %v1713 = vld [vmem:[%s17 + $0x18] sm:$0xff]
    %v1714 = vld [vmem:[%s17 + $0x20] sm:$0xff]
    %v1715 = vld [vmem:[%s17 + $0x28] sm:$0xff]
    %v1716 = vld [vmem:[%s17 + $0x30] sm:$0xff]
    %v1717 = vld [vmem:[%s17 + $0x38] sm:$0xff]
    %v1718 = vld [vmem:[%s17 + $0x40] sm:$0xff]
    %v1719 = vld [vmem:[%s17 + $0x48] sm:$0xff]
    %v1720 = vld [vmem:[%s17 + $0x50] sm:$0xff]
    %v1721 = vld [vmem:[%s17 + $0x58] sm:$0xff]
    %v1722 = vld [vmem:[%s17 + $0x60] sm:$0xff]
    %v1723 = vld [vmem:[%s17 + $0x68] sm:$0xff]
    %v1724 = vld [vmem:[%s17 + $0x70] sm:$0xff]
    %v1725 = vld [vmem:[%s17 + $0x78] sm:$0xff]
    %v1726 = vld [vmem:[%s18] sm:$0x3]
    %v1727 = vpack.c.bf16 %v1709, %v1709
    %v1729 = vlaneseq
    %v1730 = vshrl.u32 %v1729, 7
    %v1731 = vsub.s32 0, %v1730
    %v1732 = vrot.slane %v1726, %v1731
    %v1733 = vlaneseq
    %v1734 = vshrl.u32 %v1733, 7
    %v1735 = vsub.s32 1, %v1734
    %v1736 = vrot.slane %v1726, %v1735
    %v1755 = vunpack.c.l.b16 %v1710
    %v1756 = vunpack.c.h.b16 %v1710
    %v1757 = vunpack.c.l.b16 %v1711
    %v1758 = vunpack.c.h.b16 %v1711
    %v1759 = vunpack.c.l.b16 %v1712
    %v1760 = vunpack.c.h.b16 %v1712
    %v1761 = vunpack.c.l.b16 %v1713
    %v1762 = vunpack.c.h.b16 %v1713
    %v1763 = vunpack.c.l.b16 %v1714
    %v1764 = vunpack.c.h.b16 %v1714
    %v1765 = vunpack.c.l.b16 %v1715
    %v1766 = vunpack.c.h.b16 %v1715
    %v1767 = vunpack.c.l.b16 %v1716
    %v1768 = vunpack.c.h.b16 %v1716
    %v1769 = vunpack.c.l.b16 %v1717
    %v1770 = vunpack.c.h.b16 %v1717
    %v1771 = vunpack.c.l.b16 %v1718
    %v1772 = vunpack.c.h.b16 %v1718
    %v1773 = vunpack.c.l.b16 %v1719
    %v1774 = vunpack.c.h.b16 %v1719
    %v1775 = vunpack.c.l.b16 %v1720
    %v1776 = vunpack.c.h.b16 %v1720
    %v1777 = vunpack.c.l.b16 %v1721
    %v1778 = vunpack.c.h.b16 %v1721
    %v1779 = vunpack.c.l.b16 %v1722
    %v1780 = vunpack.c.h.b16 %v1722
    %v1781 = vunpack.c.l.b16 %v1723
    %v1782 = vunpack.c.h.b16 %v1723
    %v1783 = vunpack.c.l.b16 %v1724
    %v1784 = vunpack.c.h.b16 %v1724
    %v1785 = vunpack.c.l.b16 %v1725
    %v1786 = vunpack.c.h.b16 %v1725
    %v1787 = vpack.c.b16 %v1757, %v1755
    %v1788 = vpack.c.b16 %v1758, %v1756
    %v1789 = vpack.c.b16 %v1761, %v1759
    %v1790 = vpack.c.b16 %v1762, %v1760
    %v1791 = vpack.c.b16 %v1765, %v1763
    %v1792 = vpack.c.b16 %v1766, %v1764
    %v1793 = vpack.c.b16 %v1769, %v1767
    %v1794 = vpack.c.b16 %v1770, %v1768
    %v1795 = vpack.c.b16 %v1773, %v1771
    %v1796 = vpack.c.b16 %v1774, %v1772
    %v1797 = vpack.c.b16 %v1777, %v1775
    %v1798 = vpack.c.b16 %v1778, %v1776
    %v1799 = vpack.c.b16 %v1781, %v1779
    %v1800 = vpack.c.b16 %v1782, %v1780
    %v1801 = vpack.c.b16 %v1785, %v1783
    %v1802 = vpack.c.b16 %v1786, %v1784
    %1819 = vmatprep.subr.bf16.mxu0 %v1802
    %1820 = vmatpush1.bf16.msra.mxu0 %v1801
    %1821 = vmatprep.subr.bf16.mxu0 %v1800
    %1822 = vmatpush1.bf16.msra.mxu0 %v1799
    %1823 = vmatprep.subr.bf16.mxu0 %v1798
    %1824 = vmatpush1.bf16.msra.mxu0 %v1797
    %1825 = vmatprep.subr.bf16.mxu0 %v1796
    %1826 = vmatpush1.bf16.msra.mxu0 %v1795
    %1827 = vmatprep.subr.bf16.mxu0 %v1794
    %1828 = vmatpush1.bf16.msra.mxu0 %v1793
    %1829 = vmatprep.subr.bf16.mxu0 %v1792
    %1830 = vmatpush1.bf16.msra.mxu0 %v1791
    %1831 = vmatprep.subr.bf16.mxu0 %v1790
    %1832 = vmatpush1.bf16.msra.mxu0 %v1789
    %1833 = vmatprep.subr.bf16.mxu0 %v1788
    %1834 = vmatpush1.bf16.msra.mxu0 %v1787
    %1835 = vmatprep.subr.bf16.mxu0 0
    %1836 = vmatpush2.bf16.msra.mxu0 0
    %1837 = vmatprep.subr.bf16.mxu0 0
    %1838 = vmatpush2.bf16.msra.mxu0 0
    %1839 = vmatprep.subr.bf16.mxu0 0
    %1840 = vmatpush2.bf16.msra.mxu0 0
    %1841 = vmatprep.subr.bf16.mxu0 0
    %1842 = vmatpush2.bf16.msra.mxu0 0
    %1843 = vmatprep.subr.bf16.mxu0 0
    %1844 = vmatpush2.bf16.msra.mxu0 0
    %1845 = vmatprep.subr.bf16.mxu0 0
    %1846 = vmatpush2.bf16.msra.mxu0 0
    %1847 = vmatprep.subr.bf16.mxu0 0
    %1848 = vmatpush2.bf16.msra.mxu0 0
    %1849 = vmatprep.subr.bf16.mxu0 0
    %1850 = vmatpush2.bf16.msra.mxu0 0
    %1851 = vmatprep.mubr.bf16.mxu0 0
    %1852 = vmatmul.mubr.bf16.gmra.mxu0 %v1727
    %v1853 = vpop.f32.mrf.mxu0
    %v1854 = vadd.f32 %v1732, %v1853
    %v1855 = vpop.f32.mrf.mxu0
    %v1856 = vadd.f32 %v1736, %v1855
    %v1857 = vpop.f32.mrf.mxu0
    %v1858 = vpop.f32.mrf.mxu0
    %1859 = vdwg.mxu0
    %v1860 = vmax.f32 %v1854, 0.0
    %v1861 = vmax.f32 %v1856, 0.0
    %v1862 = vld [vmem:[%s19] sm:$0xff]
    %v1863 = vld [vmem:[%s19 + $0x8] sm:$0xff]
    %v1864 = vld [vmem:[%s19 + $0x10] sm:$0xff]
    %v1865 = vld [vmem:[%s19 + $0x18] sm:$0xf]
    %v1866 = vld [vmem:[%s19 + $0x1c] sm:$0xff]
    %v1867 = vld [vmem:[%s19 + $0x24] sm:$0xff]
    %v1868 = vld [vmem:[%s19 + $0x2c] sm:$0xff]
    %v1869 = vld [vmem:[%s19 + $0x34] sm:$0xf]
    %v1870 = vld [vmem:[%s19 + $0x38] sm:$0xff]
    %v1871 = vld [vmem:[%s19 + $0x40] sm:$0xff]
    %v1872 = vld [vmem:[%s19 + $0x48] sm:$0xff]
    %v1873 = vld [vmem:[%s19 + $0x50] sm:$0xf]
    %v1874 = vld [vmem:[%s19 + $0x54] sm:$0xff]
    %v1875 = vld [vmem:[%s19 + $0x5c] sm:$0xff]
    %v1876 = vld [vmem:[%s19 + $0x64] sm:$0xff]
    %v1877 = vld [vmem:[%s19 + $0x6c] sm:$0xf]
    %v1878 = vld [vmem:[%s19 + $0x70] sm:$0xff]
    %v1879 = vld [vmem:[%s19 + $0x78] sm:$0xff]
    %v1880 = vld [vmem:[%s19 + $0x80] sm:$0xff]
    %v1881 = vld [vmem:[%s19 + $0x88] sm:$0xf]
    %v1882 = vld [vmem:[%s19 + $0x8c] sm:$0xff]
    %v1883 = vld [vmem:[%s19 + $0x94] sm:$0xff]
    %v1884 = vld [vmem:[%s19 + $0x9c] sm:$0xff]
    %v1885 = vld [vmem:[%s19 + $0xa4] sm:$0xf]
    %v1886 = vld [vmem:[%s19 + $0xa8] sm:$0xff]
    %v1887 = vld [vmem:[%s19 + $0xb0] sm:$0xff]
    %v1888 = vld [vmem:[%s19 + $0xb8] sm:$0xff]
    %v1889 = vld [vmem:[%s19 + $0xc0] sm:$0xf]
    %v1890 = vld [vmem:[%s19 + $0xc4] sm:$0xff]
    %v1891 = vld [vmem:[%s19 + $0xcc] sm:$0xff]
    %v1892 = vld [vmem:[%s19 + $0xd4] sm:$0xff]
    %v1893 = vld [vmem:[%s19 + $0xdc] sm:$0xf]
    %v1894 = vld [vmem:[%s19 + $0xe0] sm:$0xff]
    %v1895 = vld [vmem:[%s19 + $0xe8] sm:$0xff]
    %v1896 = vld [vmem:[%s19 + $0xf0] sm:$0xff]
    %v1897 = vld [vmem:[%s19 + $0xf8] sm:$0xf]
    %v1898 = vld [vmem:[%s19 + $0xfc] sm:$0xff]
    %v1899 = vld [vmem:[%s19 + $0x104] sm:$0xff]
    %v1900 = vld [vmem:[%s19 + $0x10c] sm:$0xff]
    %v1901 = vld [vmem:[%s19 + $0x114] sm:$0xf]
    %v1902 = vld [vmem:[%s19 + $0x118] sm:$0xff]
    %v1903 = vld [vmem:[%s19 + $0x120] sm:$0xff]
    %v1904 = vld [vmem:[%s19 + $0x128] sm:$0xff]
    %v1905 = vld [vmem:[%s19 + $0x130] sm:$0xf]
    %v1906 = vld [vmem:[%s19 + $0x134] sm:$0xff]
    %v1907 = vld [vmem:[%s19 + $0x13c] sm:$0xff]
    %v1908 = vld [vmem:[%s19 + $0x144] sm:$0xff]
    %v1909 = vld [vmem:[%s19 + $0x14c] sm:$0xf]
    %v1910 = vld [vmem:[%s19 + $0x150] sm:$0xff]
    %v1911 = vld [vmem:[%s19 + $0x158] sm:$0xff]
    %v1912 = vld [vmem:[%s19 + $0x160] sm:$0xff]
    %v1913 = vld [vmem:[%s19 + $0x168] sm:$0xf]
    %v1914 = vld [vmem:[%s19 + $0x16c] sm:$0xff]
    %v1915 = vld [vmem:[%s19 + $0x174] sm:$0xff]
    %v1916 = vld [vmem:[%s19 + $0x17c] sm:$0xff]
    %v1917 = vld [vmem:[%s19 + $0x184] sm:$0xf]
    %v1918 = vld [vmem:[%s19 + $0x188] sm:$0xff]
    %v1919 = vld [vmem:[%s19 + $0x190] sm:$0xff]
    %v1920 = vld [vmem:[%s19 + $0x198] sm:$0xff]
    %v1921 = vld [vmem:[%s19 + $0x1a0] sm:$0xf]
    %v1922 = vld [vmem:[%s19 + $0x1a4] sm:$0xff]
    %v1923 = vld [vmem:[%s19 + $0x1ac] sm:$0xff]
    %v1924 = vld [vmem:[%s19 + $0x1b4] sm:$0xff]
    %v1925 = vld [vmem:[%s19 + $0x1bc] sm:$0xf]
    %v1926 = vld [vmem:[%s19 + $0x1c0] sm:$0xff]
    %v1927 = vld [vmem:[%s19 + $0x1c8] sm:$0xff]
    %v1928 = vld [vmem:[%s19 + $0x1d0] sm:$0xff]
    %v1929 = vld [vmem:[%s19 + $0x1d8] sm:$0xf]
    %v1930 = vld [vmem:[%s19 + $0x1dc] sm:$0xff]
    %v1931 = vld [vmem:[%s19 + $0x1e4] sm:$0xff]
    %v1932 = vld [vmem:[%s19 + $0x1ec] sm:$0xff]
    %v1933 = vld [vmem:[%s19 + $0x1f4] sm:$0xf]
    %v1934 = vld [vmem:[%s19 + $0x1f8] sm:$0xff]
    %v1935 = vld [vmem:[%s19 + $0x200] sm:$0xff]
    %v1936 = vld [vmem:[%s19 + $0x208] sm:$0xff]
    %v1937 = vld [vmem:[%s19 + $0x210] sm:$0xf]
    %v1938 = vld [vmem:[%s19 + $0x214] sm:$0xff]
    %v1939 = vld [vmem:[%s19 + $0x21c] sm:$0xff]
    %v1940 = vld [vmem:[%s19 + $0x224] sm:$0xff]
    %v1941 = vld [vmem:[%s19 + $0x22c] sm:$0xf]
    %v1942 = vld [vmem:[%s19 + $0x230] sm:$0xff]
    %v1943 = vld [vmem:[%s19 + $0x238] sm:$0xff]
    %v1944 = vld [vmem:[%s19 + $0x240] sm:$0xff]
    %v1945 = vld [vmem:[%s19 + $0x248] sm:$0xf]
    %v1946 = vld [vmem:[%s19 + $0x24c] sm:$0xff]
    %v1947 = vld [vmem:[%s19 + $0x254] sm:$0xff]
    %v1948 = vld [vmem:[%s19 + $0x25c] sm:$0xff]
    %v1949 = vld [vmem:[%s19 + $0x264] sm:$0xf]
    %v1950 = vld [vmem:[%s19 + $0x268] sm:$0xff]
    %v1951 = vld [vmem:[%s19 + $0x270] sm:$0xff]
    %v1952 = vld [vmem:[%s19 + $0x278] sm:$0xff]
    %v1953 = vld [vmem:[%s19 + $0x280] sm:$0xf]
    %v1954 = vld [vmem:[%s19 + $0x284] sm:$0xff]
    %v1955 = vld [vmem:[%s19 + $0x28c] sm:$0xff]
    %v1956 = vld [vmem:[%s19 + $0x294] sm:$0xff]
    %v1957 = vld [vmem:[%s19 + $0x29c] sm:$0xf]
    %v1958 = vld [vmem:[%s19 + $0x2a0] sm:$0xff]
    %v1959 = vld [vmem:[%s19 + $0x2a8] sm:$0xff]
    %v1960 = vld [vmem:[%s19 + $0x2b0] sm:$0xff]
    %v1961 = vld [vmem:[%s19 + $0x2b8] sm:$0xf]
    %v1962 = vld [vmem:[%s19 + $0x2bc] sm:$0xff]
    %v1963 = vld [vmem:[%s19 + $0x2c4] sm:$0xff]
    %v1964 = vld [vmem:[%s19 + $0x2cc] sm:$0xff]
    %v1965 = vld [vmem:[%s19 + $0x2d4] sm:$0xf]
    %v1966 = vld [vmem:[%s19 + $0x2d8] sm:$0xff]
    %v1967 = vld [vmem:[%s19 + $0x2e0] sm:$0xff]
    %v1968 = vld [vmem:[%s19 + $0x2e8] sm:$0xff]
    %v1969 = vld [vmem:[%s19 + $0x2f0] sm:$0xf]
    %v1970 = vld [vmem:[%s19 + $0x2f4] sm:$0xff]
    %v1971 = vld [vmem:[%s19 + $0x2fc] sm:$0xff]
    %v1972 = vld [vmem:[%s19 + $0x304] sm:$0xff]
    %v1973 = vld [vmem:[%s19 + $0x30c] sm:$0xf]
    %v1974 = vld [vmem:[%s19 + $0x310] sm:$0xff]
    %v1975 = vld [vmem:[%s19 + $0x318] sm:$0xff]
    %v1976 = vld [vmem:[%s19 + $0x320] sm:$0xff]
    %v1977 = vld [vmem:[%s19 + $0x328] sm:$0xf]
    %v1978 = vld [vmem:[%s19 + $0x32c] sm:$0xff]
    %v1979 = vld [vmem:[%s19 + $0x334] sm:$0xff]
    %v1980 = vld [vmem:[%s19 + $0x33c] sm:$0xff]
    %v1981 = vld [vmem:[%s19 + $0x344] sm:$0xf]
    %v1982 = vld [vmem:[%s19 + $0x348] sm:$0xff]
    %v1983 = vld [vmem:[%s19 + $0x350] sm:$0xff]
    %v1984 = vld [vmem:[%s19 + $0x358] sm:$0xff]
    %v1985 = vld [vmem:[%s19 + $0x360] sm:$0xf]
    %v1986 = vld [vmem:[%s19 + $0x364] sm:$0xff]
    %v1987 = vld [vmem:[%s19 + $0x36c] sm:$0xff]
    %v1988 = vld [vmem:[%s19 + $0x374] sm:$0xff]
    %v1989 = vld [vmem:[%s19 + $0x37c] sm:$0xf]
    %v1990 = vld [vmem:[%s20] sm:$0x7f]
    %v1991 = vpack.c.bf16 %v1860, %v1860
    %v1992 = vpack.c.bf16 %v1861, %v1861
    %v1994 = vlaneseq
    %v1995 = vshrl.u32 %v1994, 7
    %v1996 = vsub.s32 0, %v1995
    %v1997 = vrot.slane %v1990, %v1996
    %v1998 = vlaneseq
    %v1999 = vshrl.u32 %v1998, 7
    %v2000 = vsub.s32 1, %v1999
    %v2001 = vrot.slane %v1990, %v2000
    %v2002 = vlaneseq
    %v2003 = vshrl.u32 %v2002, 7
    %v2004 = vsub.s32 2, %v2003
    %v2005 = vrot.slane %v1990, %v2004
    %v2006 = vlaneseq
    %v2007 = vshrl.u32 %v2006, 7
    %v2008 = vsub.s32 3, %v2007
    %v2009 = vrot.slane %v1990, %v2008
    %v2010 = vlaneseq
    %v2011 = vshrl.u32 %v2010, 7
    %v2012 = vsub.s32 4, %v2011
    %v2013 = vrot.slane %v1990, %v2012
    %v2014 = vlaneseq
    %v2015 = vshrl.u32 %v2014, 7
    %v2016 = vsub.s32 5, %v2015
    %v2017 = vrot.slane %v1990, %v2016
    %v2018 = vlaneseq
    %v2019 = vshrl.u32 %v2018, 7
    %v2020 = vsub.s32 6, %v2019
    %v2021 = vrot.slane %v1990, %v2020
    %v2157 = vunpack.c.l.b16 %v1862
    %v2158 = vunpack.c.h.b16 %v1862
    %v2159 = vunpack.c.l.b16 %v1863
    %v2160 = vunpack.c.h.b16 %v1863
    %v2161 = vunpack.c.l.b16 %v1864
    %v2162 = vunpack.c.h.b16 %v1864
    %v2163 = vunpack.c.l.b16 %v1865
    %v2164 = vunpack.c.l.b16 %v1866
    %v2165 = vunpack.c.h.b16 %v1866
    %v2166 = vunpack.c.l.b16 %v1867
    %v2167 = vunpack.c.h.b16 %v1867
    %v2168 = vunpack.c.l.b16 %v1868
    %v2169 = vunpack.c.h.b16 %v1868
    %v2170 = vunpack.c.l.b16 %v1869
    %v2171 = vunpack.c.l.b16 %v1870
    %v2172 = vunpack.c.h.b16 %v1870
    %v2173 = vunpack.c.l.b16 %v1871
    %v2174 = vunpack.c.h.b16 %v1871
    %v2175 = vunpack.c.l.b16 %v1872
    %v2176 = vunpack.c.h.b16 %v1872
    %v2177 = vunpack.c.l.b16 %v1873
    %v2178 = vunpack.c.l.b16 %v1874
    %v2179 = vunpack.c.h.b16 %v1874
    %v2180 = vunpack.c.l.b16 %v1875
    %v2181 = vunpack.c.h.b16 %v1875
    %v2182 = vunpack.c.l.b16 %v1876
    %v2183 = vunpack.c.h.b16 %v1876
    %v2184 = vunpack.c.l.b16 %v1877
    %v2185 = vunpack.c.l.b16 %v1878
    %v2186 = vunpack.c.h.b16 %v1878
    %v2187 = vunpack.c.l.b16 %v1879
    %v2188 = vunpack.c.h.b16 %v1879
    %v2189 = vunpack.c.l.b16 %v1880
    %v2190 = vunpack.c.h.b16 %v1880
    %v2191 = vunpack.c.l.b16 %v1881
    %v2192 = vunpack.c.l.b16 %v1882
    %v2193 = vunpack.c.h.b16 %v1882
    %v2194 = vunpack.c.l.b16 %v1883
    %v2195 = vunpack.c.h.b16 %v1883
    %v2196 = vunpack.c.l.b16 %v1884
    %v2197 = vunpack.c.h.b16 %v1884
    %v2198 = vunpack.c.l.b16 %v1885
    %v2199 = vunpack.c.l.b16 %v1886
    %v2200 = vunpack.c.h.b16 %v1886
    %v2201 = vunpack.c.l.b16 %v1887
    %v2202 = vunpack.c.h.b16 %v1887
    %v2203 = vunpack.c.l.b16 %v1888
    %v2204 = vunpack.c.h.b16 %v1888
    %v2205 = vunpack.c.l.b16 %v1889
    %v2206 = vunpack.c.l.b16 %v1890
    %v2207 = vunpack.c.h.b16 %v1890
    %v2208 = vunpack.c.l.b16 %v1891
    %v2209 = vunpack.c.h.b16 %v1891
    %v2210 = vunpack.c.l.b16 %v1892
    %v2211 = vunpack.c.h.b16 %v1892
    %v2212 = vunpack.c.l.b16 %v1893
    %v2213 = vunpack.c.l.b16 %v1894
    %v2214 = vunpack.c.h.b16 %v1894
    %v2215 = vunpack.c.l.b16 %v1895
    %v2216 = vunpack.c.h.b16 %v1895
    %v2217 = vunpack.c.l.b16 %v1896
    %v2218 = vunpack.c.h.b16 %v1896
    %v2219 = vunpack.c.l.b16 %v1897
    %v2220 = vunpack.c.l.b16 %v1898
    %v2221 = vunpack.c.h.b16 %v1898
    %v2222 = vunpack.c.l.b16 %v1899
    %v2223 = vunpack.c.h.b16 %v1899
    %v2224 = vunpack.c.l.b16 %v1900
    %v2225 = vunpack.c.h.b16 %v1900
    %v2226 = vunpack.c.l.b16 %v1901
    %v2227 = vunpack.c.l.b16 %v1902
    %v2228 = vunpack.c.h.b16 %v1902
    %v2229 = vunpack.c.l.b16 %v1903
    %v2230 = vunpack.c.h.b16 %v1903
    %v2231 = vunpack.c.l.b16 %v1904
    %v2232 = vunpack.c.h.b16 %v1904
    %v2233 = vunpack.c.l.b16 %v1905
    %v2234 = vunpack.c.l.b16 %v1906
    %v2235 = vunpack.c.h.b16 %v1906
    %v2236 = vunpack.c.l.b16 %v1907
    %v2237 = vunpack.c.h.b16 %v1907
    %v2238 = vunpack.c.l.b16 %v1908
    %v2239 = vunpack.c.h.b16 %v1908
    %v2240 = vunpack.c.l.b16 %v1909
    %v2241 = vunpack.c.l.b16 %v1910
    %v2242 = vunpack.c.h.b16 %v1910
    %v2243 = vunpack.c.l.b16 %v1911
    %v2244 = vunpack.c.h.b16 %v1911
    %v2245 = vunpack.c.l.b16 %v1912
    %v2246 = vunpack.c.h.b16 %v1912
    %v2247 = vunpack.c.l.b16 %v1913
    %v2248 = vunpack.c.l.b16 %v1914
    %v2249 = vunpack.c.h.b16 %v1914
    %v2250 = vunpack.c.l.b16 %v1915
    %v2251 = vunpack.c.h.b16 %v1915
    %v2252 = vunpack.c.l.b16 %v1916
    %v2253 = vunpack.c.h.b16 %v1916
    %v2254 = vunpack.c.l.b16 %v1917
    %v2255 = vunpack.c.l.b16 %v1918
    %v2256 = vunpack.c.h.b16 %v1918
    %v2257 = vunpack.c.l.b16 %v1919
    %v2258 = vunpack.c.h.b16 %v1919
    %v2259 = vunpack.c.l.b16 %v1920
    %v2260 = vunpack.c.h.b16 %v1920
    %v2261 = vunpack.c.l.b16 %v1921
    %v2262 = vunpack.c.l.b16 %v1922
    %v2263 = vunpack.c.h.b16 %v1922
    %v2264 = vunpack.c.l.b16 %v1923
    %v2265 = vunpack.c.h.b16 %v1923
    %v2266 = vunpack.c.l.b16 %v1924
    %v2267 = vunpack.c.h.b16 %v1924
    %v2268 = vunpack.c.l.b16 %v1925
    %v2269 = vunpack.c.l.b16 %v1926
    %v2270 = vunpack.c.h.b16 %v1926
    %v2271 = vunpack.c.l.b16 %v1927
    %v2272 = vunpack.c.h.b16 %v1927
    %v2273 = vunpack.c.l.b16 %v1928
    %v2274 = vunpack.c.h.b16 %v1928
    %v2275 = vunpack.c.l.b16 %v1929
    %v2276 = vunpack.c.l.b16 %v1930
    %v2277 = vunpack.c.h.b16 %v1930
    %v2278 = vunpack.c.l.b16 %v1931
    %v2279 = vunpack.c.h.b16 %v1931
    %v2280 = vunpack.c.l.b16 %v1932
    %v2281 = vunpack.c.h.b16 %v1932
    %v2282 = vunpack.c.l.b16 %v1933
    %v2283 = vunpack.c.l.b16 %v1934
    %v2284 = vunpack.c.h.b16 %v1934
    %v2285 = vunpack.c.l.b16 %v1935
    %v2286 = vunpack.c.h.b16 %v1935
    %v2287 = vunpack.c.l.b16 %v1936
    %v2288 = vunpack.c.h.b16 %v1936
    %v2289 = vunpack.c.l.b16 %v1937
    %v2290 = vunpack.c.l.b16 %v1938
    %v2291 = vunpack.c.h.b16 %v1938
    %v2292 = vunpack.c.l.b16 %v1939
    %v2293 = vunpack.c.h.b16 %v1939
    %v2294 = vunpack.c.l.b16 %v1940
    %v2295 = vunpack.c.h.b16 %v1940
    %v2296 = vunpack.c.l.b16 %v1941
    %v2297 = vunpack.c.l.b16 %v1942
    %v2298 = vunpack.c.h.b16 %v1942
    %v2299 = vunpack.c.l.b16 %v1943
    %v2300 = vunpack.c.h.b16 %v1943
    %v2301 = vunpack.c.l.b16 %v1944
    %v2302 = vunpack.c.h.b16 %v1944
    %v2303 = vunpack.c.l.b16 %v1945
    %v2304 = vunpack.c.l.b16 %v1946
    %v2305 = vunpack.c.h.b16 %v1946
    %v2306 = vunpack.c.l.b16 %v1947
    %v2307 = vunpack.c.h.b16 %v1947
    %v2308 = vunpack.c.l.b16 %v1948
    %v2309 = vunpack.c.h.b16 %v1948
    %v2310 = vunpack.c.l.b16 %v1949
    %v2311 = vunpack.c.l.b16 %v1950
    %v2312 = vunpack.c.h.b16 %v1950
    %v2313 = vunpack.c.l.b16 %v1951
    %v2314 = vunpack.c.h.b16 %v1951
    %v2315 = vunpack.c.l.b16 %v1952
    %v2316 = vunpack.c.h.b16 %v1952
    %v2317 = vunpack.c.l.b16 %v1953
    %v2318 = vunpack.c.l.b16 %v1954
    %v2319 = vunpack.c.h.b16 %v1954
    %v2320 = vunpack.c.l.b16 %v1955
    %v2321 = vunpack.c.h.b16 %v1955
    %v2322 = vunpack.c.l.b16 %v1956
    %v2323 = vunpack.c.h.b16 %v1956
    %v2324 = vunpack.c.l.b16 %v1957
    %v2325 = vunpack.c.l.b16 %v1958
    %v2326 = vunpack.c.h.b16 %v1958
    %v2327 = vunpack.c.l.b16 %v1959
    %v2328 = vunpack.c.h.b16 %v1959
    %v2329 = vunpack.c.l.b16 %v1960
    %v2330 = vunpack.c.h.b16 %v1960
    %v2331 = vunpack.c.l.b16 %v1961
    %v2332 = vunpack.c.l.b16 %v1962
    %v2333 = vunpack.c.h.b16 %v1962
    %v2334 = vunpack.c.l.b16 %v1963
    %v2335 = vunpack.c.h.b16 %v1963
    %v2336 = vunpack.c.l.b16 %v1964
    %v2337 = vunpack.c.h.b16 %v1964
    %v2338 = vunpack.c.l.b16 %v1965
    %v2339 = vunpack.c.l.b16 %v1966
    %v2340 = vunpack.c.h.b16 %v1966
    %v2341 = vunpack.c.l.b16 %v1967
    %v2342 = vunpack.c.h.b16 %v1967
    %v2343 = vunpack.c.l.b16 %v1968
    %v2344 = vunpack.c.h.b16 %v1968
    %v2345 = vunpack.c.l.b16 %v1969
    %v2346 = vunpack.c.l.b16 %v1970
    %v2347 = vunpack.c.h.b16 %v1970
    %v2348 = vunpack.c.l.b16 %v1971
    %v2349 = vunpack.c.h.b16 %v1971
    %v2350 = vunpack.c.l.b16 %v1972
    %v2351 = vunpack.c.h.b16 %v1972
    %v2352 = vunpack.c.l.b16 %v1973
    %v2353 = vunpack.c.l.b16 %v1974
    %v2354 = vunpack.c.h.b16 %v1974
    %v2355 = vunpack.c.l.b16 %v1975
    %v2356 = vunpack.c.h.b16 %v1975
    %v2357 = vunpack.c.l.b16 %v1976
    %v2358 = vunpack.c.h.b16 %v1976
    %v2359 = vunpack.c.l.b16 %v1977
    %v2360 = vunpack.c.l.b16 %v1978
    %v2361 = vunpack.c.h.b16 %v1978
    %v2362 = vunpack.c.l.b16 %v1979
    %v2363 = vunpack.c.h.b16 %v1979
    %v2364 = vunpack.c.l.b16 %v1980
    %v2365 = vunpack.c.h.b16 %v1980
    %v2366 = vunpack.c.l.b16 %v1981
    %v2367 = vunpack.c.l.b16 %v1982
    %v2368 = vunpack.c.h.b16 %v1982
    %v2369 = vunpack.c.l.b16 %v1983
    %v2370 = vunpack.c.h.b16 %v1983
    %v2371 = vunpack.c.l.b16 %v1984
    %v2372 = vunpack.c.h.b16 %v1984
    %v2373 = vunpack.c.l.b16 %v1985
    %v2374 = vunpack.c.l.b16 %v1986
    %v2375 = vunpack.c.h.b16 %v1986
    %v2376 = vunpack.c.l.b16 %v1987
    %v2377 = vunpack.c.h.b16 %v1987
    %v2378 = vunpack.c.l.b16 %v1988
    %v2379 = vunpack.c.h.b16 %v1988
    %v2380 = vunpack.c.l.b16 %v1989
    %v2381 = vpack.c.b16 %v2164, %v2157
    %v2382 = vpack.c.b16 %v2165, %v2158
    %v2383 = vpack.c.b16 %v2166, %v2159
    %v2384 = vpack.c.b16 %v2167, %v2160
    %v2385 = vpack.c.b16 %v2168, %v2161
    %v2386 = vpack.c.b16 %v2169, %v2162
    %v2387 = vpack.c.b16 %v2170, %v2163
    %v2388 = vpack.c.b16 %v2178, %v2171
    %v2389 = vpack.c.b16 %v2179, %v2172
    %v2390 = vpack.c.b16 %v2180, %v2173
    %v2391 = vpack.c.b16 %v2181, %v2174
    %v2392 = vpack.c.b16 %v2182, %v2175
    %v2393 = vpack.c.b16 %v2183, %v2176
    %v2394 = vpack.c.b16 %v2184, %v2177
    %v2395 = vpack.c.b16 %v2192, %v2185
    %v2396 = vpack.c.b16 %v2193, %v2186
    %v2397 = vpack.c.b16 %v2194, %v2187
    %v2398 = vpack.c.b16 %v2195, %v2188
    %v2399 = vpack.c.b16 %v2196, %v2189
    %v2400 = vpack.c.b16 %v2197, %v2190
    %v2401 = vpack.c.b16 %v2198, %v2191
    %v2402 = vpack.c.b16 %v2206, %v2199
    %v2403 = vpack.c.b16 %v2207, %v2200
    %v2404 = vpack.c.b16 %v2208, %v2201
    %v2405 = vpack.c.b16 %v2209, %v2202
    %v2406 = vpack.c.b16 %v2210, %v2203
    %v2407 = vpack.c.b16 %v2211, %v2204
    %v2408 = vpack.c.b16 %v2212, %v2205
    %v2409 = vpack.c.b16 %v2220, %v2213
    %v2410 = vpack.c.b16 %v2221, %v2214
    %v2411 = vpack.c.b16 %v2222, %v2215
    %v2412 = vpack.c.b16 %v2223, %v2216
    %v2413 = vpack.c.b16 %v2224, %v2217
    %v2414 = vpack.c.b16 %v2225, %v2218
    %v2415 = vpack.c.b16 %v2226, %v2219
    %v2416 = vpack.c.b16 %v2234, %v2227
    %v2417 = vpack.c.b16 %v2235, %v2228
    %v2418 = vpack.c.b16 %v2236, %v2229
    %v2419 = vpack.c.b16 %v2237, %v2230
    %v2420 = vpack.c.b16 %v2238, %v2231
    %v2421 = vpack.c.b16 %v2239, %v2232
    %v2422 = vpack.c.b16 %v2240, %v2233
    %v2423 = vpack.c.b16 %v2248, %v2241
    %v2424 = vpack.c.b16 %v2249, %v2242
    %v2425 = vpack.c.b16 %v2250, %v2243
    %v2426 = vpack.c.b16 %v2251, %v2244
    %v2427 = vpack.c.b16 %v2252, %v2245
    %v2428 = vpack.c.b16 %v2253, %v2246
    %v2429 = vpack.c.b16 %v2254, %v2247
    %v2430 = vpack.c.b16 %v2262, %v2255
    %v2431 = vpack.c.b16 %v2263, %v2256
    %v2432 = vpack.c.b16 %v2264, %v2257
    %v2433 = vpack.c.b16 %v2265, %v2258
    %v2434 = vpack.c.b16 %v2266, %v2259
    %v2435 = vpack.c.b16 %v2267, %v2260
    %v2436 = vpack.c.b16 %v2268, %v2261
    %v2437 = vpack.c.b16 %v2276, %v2269
    %v2438 = vpack.c.b16 %v2277, %v2270
    %v2439 = vpack.c.b16 %v2278, %v2271
    %v2440 = vpack.c.b16 %v2279, %v2272
    %v2441 = vpack.c.b16 %v2280, %v2273
    %v2442 = vpack.c.b16 %v2281, %v2274
    %v2443 = vpack.c.b16 %v2282, %v2275
    %v2444 = vpack.c.b16 %v2290, %v2283
    %v2445 = vpack.c.b16 %v2291, %v2284
    %v2446 = vpack.c.b16 %v2292, %v2285
    %v2447 = vpack.c.b16 %v2293, %v2286
    %v2448 = vpack.c.b16 %v2294, %v2287
    %v2449 = vpack.c.b16 %v2295, %v2288
    %v2450 = vpack.c.b16 %v2296, %v2289
    %v2451 = vpack.c.b16 %v2304, %v2297
    %v2452 = vpack.c.b16 %v2305, %v2298
    %v2453 = vpack.c.b16 %v2306, %v2299
    %v2454 = vpack.c.b16 %v2307, %v2300
    %v2455 = vpack.c.b16 %v2308, %v2301
    %v2456 = vpack.c.b16 %v2309, %v2302
    %v2457 = vpack.c.b16 %v2310, %v2303
    %v2458 = vpack.c.b16 %v2318, %v2311
    %v2459 = vpack.c.b16 %v2319, %v2312
    %v2460 = vpack.c.b16 %v2320, %v2313
    %v2461 = vpack.c.b16 %v2321, %v2314
    %v2462 = vpack.c.b16 %v2322, %v2315
    %v2463 = vpack.c.b16 %v2323, %v2316
    %v2464 = vpack.c.b16 %v2324, %v2317
    %v2465 = vpack.c.b16 %v2332, %v2325
    %v2466 = vpack.c.b16 %v2333, %v2326
    %v2467 = vpack.c.b16 %v2334, %v2327
    %v2468 = vpack.c.b16 %v2335, %v2328
    %v2469 = vpack.c.b16 %v2336, %v2329
    %v2470 = vpack.c.b16 %v2337, %v2330
    %v2471 = vpack.c.b16 %v2338, %v2331
    %v2472 = vpack.c.b16 %v2346, %v2339
    %v2473 = vpack.c.b16 %v2347, %v2340
    %v2474 = vpack.c.b16 %v2348, %v2341
    %v2475 = vpack.c.b16 %v2349, %v2342
    %v2476 = vpack.c.b16 %v2350, %v2343
    %v2477 = vpack.c.b16 %v2351, %v2344
    %v2478 = vpack.c.b16 %v2352, %v2345
    %v2479 = vpack.c.b16 %v2360, %v2353
    %v2480 = vpack.c.b16 %v2361, %v2354
    %v2481 = vpack.c.b16 %v2362, %v2355
    %v2482 = vpack.c.b16 %v2363, %v2356
    %v2483 = vpack.c.b16 %v2364, %v2357
    %v2484 = vpack.c.b16 %v2365, %v2358
    %v2485 = vpack.c.b16 %v2366, %v2359
    %v2486 = vpack.c.b16 %v2374, %v2367
    %v2487 = vpack.c.b16 %v2375, %v2368
    %v2488 = vpack.c.b16 %v2376, %v2369
    %v2489 = vpack.c.b16 %v2377, %v2370
    %v2490 = vpack.c.b16 %v2378, %v2371
    %v2491 = vpack.c.b16 %v2379, %v2372
    %v2492 = vpack.c.b16 %v2380, %v2373
    %2605 = vmatprep.subr.bf16.mxu0 %v2431
    %2606 = vmatpush1.bf16.msra.mxu0 %v2430
    %2607 = vmatprep.subr.bf16.mxu0 %v2424
    %2608 = vmatpush1.bf16.msra.mxu0 %v2423
    %2609 = vmatprep.subr.bf16.mxu0 %v2417
    %2610 = vmatpush1.bf16.msra.mxu0 %v2416
    %2611 = vmatprep.subr.bf16.mxu0 %v2410
    %2612 = vmatpush1.bf16.msra.mxu0 %v2409
    %2613 = vmatprep.subr.bf16.mxu0 %v2403
    %2614 = vmatpush1.bf16.msra.mxu0 %v2402
    %2615 = vmatprep.subr.bf16.mxu0 %v2396
    %2616 = vmatpush1.bf16.msra.mxu0 %v2395
    %2617 = vmatprep.subr.bf16.mxu0 %v2389
    %2618 = vmatpush1.bf16.msra.mxu0 %v2388
    %2619 = vmatprep.subr.bf16.mxu0 %v2382
    %2620 = vmatpush1.bf16.msra.mxu0 %v2381
    %2621 = vmatprep.subr.bf16.mxu0 %v2487
    %2622 = vmatpush2.bf16.msra.mxu0 %v2486
    %2623 = vmatprep.subr.bf16.mxu0 %v2480
    %2624 = vmatpush2.bf16.msra.mxu0 %v2479
    %2625 = vmatprep.subr.bf16.mxu0 %v2473
    %2626 = vmatpush2.bf16.msra.mxu0 %v2472
    %2627 = vmatprep.subr.bf16.mxu0 %v2466
    %2628 = vmatpush2.bf16.msra.mxu0 %v2465
    %2629 = vmatprep.subr.bf16.mxu0 %v2459
    %2630 = vmatpush2.bf16.msra.mxu0 %v2458
    %2631 = vmatprep.subr.bf16.mxu0 %v2452
    %2632 = vmatpush2.bf16.msra.mxu0 %v2451
    %2633 = vmatprep.subr.bf16.mxu0 %v2445
    %2634 = vmatpush2.bf16.msra.mxu0 %v2444
    %2635 = vmatprep.subr.bf16.mxu0 %v2438
    %2636 = vmatpush2.bf16.msra.mxu0 %v2437
    %2637 = vmatprep.mubr.bf16.mxu0 %v1992
    %2638 = vmatmul.mubr.bf16.gmra.mxu0 %v1991
    %v2639 = vpop.f32.mrf.mxu0
    %v2640 = vadd.f32 %v1997, %v2639
    %v2641 = vpop.f32.mrf.mxu0
    %v2642 = vadd.f32 %v2001, %v2641
    %v2643 = vpop.f32.mrf.mxu0
    %v2644 = vpop.f32.mrf.mxu0
    %2645 = vdwg.mxu0
    %2646 = vmatprep.subr.bf16.mxu0 %v2433
    %2647 = vmatpush1.bf16.msra.mxu0 %v2432
    %2648 = vmatprep.subr.bf16.mxu0 %v2426
    %2649 = vmatpush1.bf16.msra.mxu0 %v2425
    %2650 = vmatprep.subr.bf16.mxu0 %v2419
    %2651 = vmatpush1.bf16.msra.mxu0 %v2418
    %2652 = vmatprep.subr.bf16.mxu0 %v2412
    %2653 = vmatpush1.bf16.msra.mxu0 %v2411
    %2654 = vmatprep.subr.bf16.mxu0 %v2405
    %2655 = vmatpush1.bf16.msra.mxu0 %v2404
    %2656 = vmatprep.subr.bf16.mxu0 %v2398
    %2657 = vmatpush1.bf16.msra.mxu0 %v2397
    %2658 = vmatprep.subr.bf16.mxu0 %v2391
    %2659 = vmatpush1.bf16.msra.mxu0 %v2390
    %2660 = vmatprep.subr.bf16.mxu0 %v2384
    %2661 = vmatpush1.bf16.msra.mxu0 %v2383
    %2662 = vmatprep.subr.bf16.mxu0 %v2489
    %2663 = vmatpush2.bf16.msra.mxu0 %v2488
    %2664 = vmatprep.subr.bf16.mxu0 %v2482
    %2665 = vmatpush2.bf16.msra.mxu0 %v2481
    %2666 = vmatprep.subr.bf16.mxu0 %v2475
    %2667 = vmatpush2.bf16.msra.mxu0 %v2474
    %2668 = vmatprep.subr.bf16.mxu0 %v2468
    %2669 = vmatpush2.bf16.msra.mxu0 %v2467
    %2670 = vmatprep.subr.bf16.mxu0 %v2461
    %2671 = vmatpush2.bf16.msra.mxu0 %v2460
    %2672 = vmatprep.subr.bf16.mxu0 %v2454
    %2673 = vmatpush2.bf16.msra.mxu0 %v2453
    %2674 = vmatprep.subr.bf16.mxu0 %v2447
    %2675 = vmatpush2.bf16.msra.mxu0 %v2446
    %2676 = vmatprep.subr.bf16.mxu0 %v2440
    %2677 = vmatpush2.bf16.msra.mxu0 %v2439
    %2678 = vmatprep.mubr.bf16.mxu0 %v1992
    %2679 = vmatmul.mubr.bf16.gmra.mxu0 %v1991
    %v2680 = vpop.f32.mrf.mxu0
    %v2681 = vadd.f32 %v2005, %v2680
    %v2682 = vpop.f32.mrf.mxu0
    %v2683 = vadd.f32 %v2009, %v2682
    %v2684 = vpop.f32.mrf.mxu0
    %v2685 = vpop.f32.mrf.mxu0
    %2686 = vdwg.mxu0
    %2687 = vmatprep.subr.bf16.mxu0 %v2435
    %2688 = vmatpush1.bf16.msra.mxu0 %v2434
    %2689 = vmatprep.subr.bf16.mxu0 %v2428
    %2690 = vmatpush1.bf16.msra.mxu0 %v2427
    %2691 = vmatprep.subr.bf16.mxu0 %v2421
    %2692 = vmatpush1.bf16.msra.mxu0 %v2420
    %2693 = vmatprep.subr.bf16.mxu0 %v2414
    %2694 = vmatpush1.bf16.msra.mxu0 %v2413
    %2695 = vmatprep.subr.bf16.mxu0 %v2407
    %2696 = vmatpush1.bf16.msra.mxu0 %v2406
    %2697 = vmatprep.subr.bf16.mxu0 %v2400
    %2698 = vmatpush1.bf16.msra.mxu0 %v2399
    %2699 = vmatprep.subr.bf16.mxu0 %v2393
    %2700 = vmatpush1.bf16.msra.mxu0 %v2392
    %2701 = vmatprep.subr.bf16.mxu0 %v2386
    %2702 = vmatpush1.bf16.msra.mxu0 %v2385
    %2703 = vmatprep.subr.bf16.mxu0 %v2491
    %2704 = vmatpush2.bf16.msra.mxu0 %v2490
    %2705 = vmatprep.subr.bf16.mxu0 %v2484
    %2706 = vmatpush2.bf16.msra.mxu0 %v2483
    %2707 = vmatprep.subr.bf16.mxu0 %v2477
    %2708 = vmatpush2.bf16.msra.mxu0 %v2476
    %2709 = vmatprep.subr.bf16.mxu0 %v2470
    %2710 = vmatpush2.bf16.msra.mxu0 %v2469
    %2711 = vmatprep.subr.bf16.mxu0 %v2463
    %2712 = vmatpush2.bf16.msra.mxu0 %v2462
    %2713 = vmatprep.subr.bf16.mxu0 %v2456
    %2714 = vmatpush2.bf16.msra.mxu0 %v2455
    %2715 = vmatprep.subr.bf16.mxu0 %v2449
    %2716 = vmatpush2.bf16.msra.mxu0 %v2448
    %2717 = vmatprep.subr.bf16.mxu0 %v2442
    %2718 = vmatpush2.bf16.msra.mxu0 %v2441
    %2719 = vmatprep.mubr.bf16.mxu0 %v1992
    %2720 = vmatmul.mubr.bf16.gmra.mxu0 %v1991
    %v2721 = vpop.f32.mrf.mxu0
    %v2722 = vadd.f32 %v2013, %v2721
    %v2723 = vpop.f32.mrf.mxu0
    %v2724 = vadd.f32 %v2017, %v2723
    %v2725 = vpop.f32.mrf.mxu0
    %v2726 = vpop.f32.mrf.mxu0
    %2727 = vdwg.mxu0
    %2728 = vmatprep.subr.bf16.mxu0 0
    %2729 = vmatpush1.bf16.msra.mxu0 %v2436
    %2730 = vmatprep.subr.bf16.mxu0 0
    %2731 = vmatpush1.bf16.msra.mxu0 %v2429
    %2732 = vmatprep.subr.bf16.mxu0 0
    %2733 = vmatpush1.bf16.msra.mxu0 %v2422
    %2734 = vmatprep.subr.bf16.mxu0 0
    %2735 = vmatpush1.bf16.msra.mxu0 %v2415
    %2736 = vmatprep.subr.bf16.mxu0 0
    %2737 = vmatpush1.bf16.msra.mxu0 %v2408
    %2738 = vmatprep.subr.bf16.mxu0 0
    %2739 = vmatpush1.bf16.msra.mxu0 %v2401
    %2740 = vmatprep.subr.bf16.mxu0 0
    %2741 = vmatpush1.bf16.msra.mxu0 %v2394
    %2742 = vmatprep.subr.bf16.mxu0 0
    %2743 = vmatpush1.bf16.msra.mxu0 %v2387
    %2744 = vmatprep.subr.bf16.mxu0 0
    %2745 = vmatpush2.bf16.msra.mxu0 %v2492
    %2746 = vmatprep.subr.bf16.mxu0 0
    %2747 = vmatpush2.bf16.msra.mxu0 %v2485
    %2748 = vmatprep.subr.bf16.mxu0 0
    %2749 = vmatpush2.bf16.msra.mxu0 %v2478
    %2750 = vmatprep.subr.bf16.mxu0 0
    %2751 = vmatpush2.bf16.msra.mxu0 %v2471
    %2752 = vmatprep.subr.bf16.mxu0 0
    %2753 = vmatpush2.bf16.msra.mxu0 %v2464
    %2754 = vmatprep.subr.bf16.mxu0 0
    %2755 = vmatpush2.bf16.msra.mxu0 %v2457
    %2756 = vmatprep.subr.bf16.mxu0 0
    %2757 = vmatpush2.bf16.msra.mxu0 %v2450
    %2758 = vmatprep.subr.bf16.mxu0 0
    %2759 = vmatpush2.bf16.msra.mxu0 %v2443
    %2760 = vmatprep.mubr.bf16.mxu0 %v1992
    %2761 = vmatmul.mubr.bf16.gmra.mxu0 %v1991
    %v2762 = vpop.f32.mrf.mxu0
    %v2763 = vadd.f32 %v2021, %v2762
    %v2764 = vpop.f32.mrf.mxu0
    %v2765 = vpop.f32.mrf.mxu0
    %v2766 = vpop.f32.mrf.mxu0
    %2767 = vdwg.mxu0
    %v2768 = vmax.f32 %v2640, 0.0
    %v2769 = vmax.f32 %v2642, 0.0
    %v2770 = vmax.f32 %v2681, 0.0
    %v2771 = vmax.f32 %v2683, 0.0
    %v2772 = vmax.f32 %v2722, 0.0
    %v2773 = vmax.f32 %v2724, 0.0
    %v2774 = vmax.f32 %v2763, 0.0
    %2775 = vst [vmem:[#allocation2] sm:$0xff] %v2768
    %2776 = vst [vmem:[#allocation2 + $0x8] sm:$0xff] %v2769
    %2777 = vst [vmem:[#allocation2 + $0x10] sm:$0xff] %v2770
    %2778 = vst [vmem:[#allocation2 + $0x18] sm:$0xff] %v2771
    %2779 = vst [vmem:[#allocation2 + $0x20] sm:$0xff] %v2772
    %2780 = vst [vmem:[#allocation2 + $0x28] sm:$0xff] %v2773
    %2781 = vst.msk [vmem:[#allocation2 + $0x30] sm:$0xff] %vm684, %v2774
    // Predicated region
    $region86: #{autoencoder_forward.1} parent=1 // pred_check
      _
    $region87: #{autoencoder_forward.1} parent=1 // pred_check_branch
      %2783 = sbr.rel (0) target = $region89
    $region88: #{autoencoder_forward.1} parent=1 // pred_region
      %s2785 = ssub.s32 896, 896
      %2786 = vsyncadd [#allocation3], %s2785
      %s2788 = sshll.u32 [#allocation2], 4
      %s2789 = int_to_ptr.vmem [resolvable:$true] %s2788
      %2791 = dma.vmem_to_hbm [thread:$0]  %s2789, 896, %s21, [#allocation3]
    $region89: #{autoencoder_forward.1} parent=1 // pred_fallthru
      _
    // Predicated region
    $region90: #{autoencoder_forward.1} parent=1 // pred_check
      _
    $region91: #{autoencoder_forward.1} parent=1 // pred_check_branch
      %2793 = sbr.rel (0) target = $region93
    $region92: #{autoencoder_forward.1} parent=1 // pred_region
      %2794 = dma.done [#allocation3], 896
    $region93: #{autoencoder_forward.1} parent=1 // pred_fallthru
      _
    %2795 = vsyncpa [#allocation3], 1

</llo_original>
